<compile_context>
chip_gen: v7x
topology: tpu7x:2x2x1
jax: 0.10.0
libtpu: 0.0.40
codegen_flags: <defaults>
</compile_context>

<pallas_src>
import jax
import jax.numpy as jnp
from jax.experimental import pallas as pl
from jax.experimental.pallas import tpu as pltpu

# ----------------------------- config (cfg / cfg_loss analogue) -----------------
FEAT_DIM = 32        # extractor.n_feats
SEM_DIM = 32         # cfg['semantic_dim']
LOC_DIM = 32         # cfg['local_dim']
HID_DIM = 48         # cfg['hidden_dim']
ENC_BLOCKS = 2       # cfg['enc_num_blocks']
DEC_BLOCKS = 2       # cfg['dec_num_blocks']
PATCH = 4            # synthetic extractor patch size
LAST_NORM = True     # cfg['last_norm']
LN_EPS = 1e-5


def _round_up(x, m):
    return ((x + m - 1) // m) * m


OUT_W = _round_up(FEAT_DIM + SEM_DIM + 1, 128)   # lane-dense output slab width


# ----------------------------- fused kernel --------------------------------------
def _make_kernel(net):
    """Build the fused per-row-tile kernel from static slab-offset metadata."""
    F, S = FEAT_DIM, SEM_DIM

    def kernel(x_ref, w_ref, b_ref, out_ref):
        def mm(x, spec):
            off, K, N, brow = spec
            w = w_ref[off:off + K, 0:N]                 # bf16 (K, N), static slice
            b = b_ref[brow:brow + 1, 0:N]               # f32 (1, N)
            return jnp.dot(x.astype(jnp.bfloat16), w,
                           preferred_element_type=jnp.float32) + b

        x = x_ref[...].astype(jnp.float32)              # (tm, 3*P*P)

        # fused extractor + first (merged sem|loc) encoder conv: one matmul
        t0 = mm(x, net["l0"])                           # (tm, F + S + L)
        dino = t0[:, :F]                                # (tm, F)
        h = jnp.maximum(t0[:, F:], 0.0)                 # (tm, S + L)

        # encoder block 0: second conv (block-diag) + skip
        enc0 = net["enc"][0]
        y = mm(h, enc0["w2"])
        if enc0["skip"] == "dup":                       # identity skip both branches
            skip = jnp.concatenate([dino, dino], axis=1)
        else:                                           # projection skip (1x1 conv)
            skip = mm(dino, enc0["skip_l"])
        h = y + skip                                    # (tm, S + L)

        # remaining encoder blocks: identity skip, block-diag weights
        for blk in net["enc"][1:]:
            y = jnp.maximum(mm(h, blk["w1"]), 0.0)
            h = mm(y, blk["w2"]) + h

        sem = h[:, :S]                                  # semantic branch

        # aggregate_proj (concat agg): h is already [sem | loc]
        r = mm(h, net["agg"])                           # (tm, HID)

        # decoder
        for blk in net["dec"]:
            if blk["fused_skip"]:
                # conv1 and the projection skip share the LHS -> one matmul
                t = mm(r, blk["w1s"])                   # (tm, 2*out): [pre | skip]
                split = blk["split"]
                y = jnp.maximum(t[:, :split], 0.0)
                r = mm(y, blk["w2"]) + t[:, split:]
            else:                                       # identity skip
                y = jnp.maximum(mm(r, blk["w1"]), 0.0)
                r = mm(y, blk["w2"]) + r

        # LayerNorm2d over channels (f32 math)
        if net["ln"] is not None:
            grow, brow = net["ln"]
            g = b_ref[grow:grow + 1, 0:F]
            be = b_ref[brow:brow + 1, 0:F]
            mean = jnp.mean(r, axis=-1, keepdims=True)
            var = jnp.mean((r - mean) * (r - mean), axis=-1, keepdims=True)
            r = (r - mean) * jax.lax.rsqrt(var + LN_EPS) * g + be

        # per-row SSE for the reconstruction loss (reduced in the wrapper)
        d = r - dino
        rowsse = jnp.sum(d * d, axis=-1, keepdims=True)  # (tm, 1)

        # direct slice writes — no zero-fill / concat temp
        out_ref[:, 0:F] = dino
        out_ref[:, F:F + S] = sem
        out_ref[:, F + S:F + S + 1] = rowsse

    return kernel


# ----------------------------- parameter packing (runs once, outside jit) --------
def _block_diag(a, b):
    za = jnp.zeros((a.shape[0], b.shape[1]), a.dtype)
    zb = jnp.zeros((b.shape[0], a.shape[1]), b.dtype)
    return jnp.concatenate(
        [jnp.concatenate([a, za], axis=1),
         jnp.concatenate([zb, b], axis=1)], axis=0)


def pack_params(params):
    """Fuse / merge weights and build the two VMEM-resident slabs.

    Returns (w_slab bf16, b_slab f32, net) where `net` holds only static
    Python ints/strings describing slab offsets per layer.
    """
    F, S, L = FEAT_DIM, SEM_DIM, LOC_DIM
    raw_w, raw_b = [], []

    def lin(w, b):
        raw_w.append(jnp.asarray(w, jnp.float32))
        raw_b.append(jnp.asarray(b, jnp.float32).reshape(-1))
        return len(raw_w) - 1

    net = {"enc": [], "dec": []}

    sb0, lb0 = params["sem_blocks"][0], params["loc_blocks"][0]
    w1m = jnp.concatenate([sb0["w1"], lb0["w1"]], axis=1)          # (F, S+L)
    b1m = jnp.concatenate([sb0["b1"], lb0["b1"]], axis=1)          # (1, S+L)
    # extractor proj + first encoder conv share the LHS -> one fused matmul.
    # Fused products are computed in f32 here; cast to bf16 only when slabbed.
    net["l0"] = lin(
        jnp.concatenate([params["ext_w"], params["ext_w"] @ w1m], axis=1),
        jnp.concatenate([params["ext_b"], params["ext_b"] @ w1m + b1m], axis=1))

    blk0 = {"w2": lin(_block_diag(sb0["w2"], lb0["w2"]),
                      jnp.concatenate([sb0["b2"], lb0["b2"]], axis=1))}
    if F == S and F == L:
        blk0["skip"] = "dup"          # identity skip on both branches -> [x, x]
    else:
        blk0["skip"] = "proj"         # projection skips exist iff dims differ
        blk0["skip_l"] = lin(jnp.concatenate([sb0["ws"], lb0["ws"]], axis=1),
                             jnp.concatenate([sb0["bs"], lb0["bs"]], axis=1))
    net["enc"].append(blk0)

    for i in range(1, ENC_BLOCKS):
        sb, lb = params["sem_blocks"][i], params["loc_blocks"][i]
        net["enc"].append({
            "w1": lin(_block_diag(sb["w1"], lb["w1"]),
                      jnp.concatenate([sb["b1"], lb["b1"]], axis=1)),
            "w2": lin(_block_diag(sb["w2"], lb["w2"]),
                      jnp.concatenate([sb["b2"], lb["b2"]], axis=1)),
        })

    net["agg"] = lin(params["agg_w"], params["agg_b"])

    for i in range(DEC_BLOCKS):
        db = params["dec_blocks"][i]
        if "ws" in db:
            out_dim = int(db["w1"].shape[1])
            # conv1 + projection skip share the LHS -> one fused matmul
            net["dec"].append({
                "fused_skip": True,
                "split": out_dim,
                "w1s": lin(jnp.concatenate([db["w1"], db["ws"]], axis=1),
                           jnp.concatenate([db["b1"], db["bs"]], axis=1)),
                "w2": lin(db["w2"], db["b2"]),
            })
        else:
            net["dec"].append({
                "fused_skip": False,
                "w1": lin(db["w1"], db["b1"]),
                "w2": lin(db["w2"], db["b2"]),
            })

    if LAST_NORM:
        ln_rows = (len(raw_b), len(raw_b) + 1)
        raw_b.append(jnp.asarray(params["ln_g"], jnp.float32).reshape(-1))
        raw_b.append(jnp.asarray(params["ln_b"], jnp.float32).reshape(-1))
        net["ln"] = ln_rows
    else:
        net["ln"] = None

    # ---- build the two slabs ----
    lanes = _round_up(max(int(w.shape[1]) for w in raw_w), 128)

    specs, blocks, row = [], [], 0
    for w in raw_w:
        K, N = int(w.shape[0]), int(w.shape[1])
        Kp = _round_up(K, 16)                          # bf16 (16,128)-tile aligned
        blocks.append(jnp.pad(w, ((0, Kp - K), (0, lanes - N))))
        specs.append((row, K, N))
        row += Kp
    w_slab = jnp.concatenate(blocks, axis=0).astype(jnp.bfloat16)

    nbp = _round_up(len(raw_b), 8)
    b_rows = [jnp.pad(b, (0, lanes - int(b.shape[0]))) for b in raw_b]
    b_rows += [jnp.zeros((lanes,), jnp.float32)] * (nbp - len(raw_b))
    b_slab = jnp.stack(b_rows, axis=0)                 # (nbp, lanes) f32

    def rs(i):
        r, K, N = specs[i]
        return (r, K, N, i)                            # bias row index == weight idx

    resolved = {"l0": rs(net["l0"]), "agg": rs(net["agg"]),
                "ln": net["ln"], "enc": [], "dec": []}
    for blk in net["enc"]:
        nb = {"skip": blk.get("skip", "id"), "w2": rs(blk["w2"])}
        if "w1" in blk:
            nb["w1"] = rs(blk["w1"])
        if "skip_l" in blk:
            nb["skip_l"] = rs(blk["skip_l"])
        resolved["enc"].append(nb)
    for blk in net["dec"]:
        nb = {"fused_skip": blk["fused_skip"], "w2": rs(blk["w2"])}
        if blk["fused_skip"]:
            nb["split"] = blk["split"]
            nb["w1s"] = rs(blk["w1s"])
        else:
            nb["w1"] = rs(blk["w1"])
        resolved["dec"].append(nb)

    return w_slab, b_slab, resolved


# ----------------------------- fused pallas_call wrapper --------------------------
def _choose_grid(M):
    """Row tile + tile count.  Single tile up to 2048 rows; for larger M keep
    the tile count even so v7x's two TensorCores both get work."""
    cap = 2048
    if M <= cap:
        return _round_up(M, 8), 1
    n = -(-M // cap)
    if n % 2:
        n += 1
    tm = _round_up(-(-M // n), 8)
    n = -(-M // tm)
    if n > 1 and n % 2:
        n += 1
    return tm, n


def fused_forward_rows(kernel, patches, w_slab, b_slab):
    M, PD = patches.shape
    tm, n_tiles = _choose_grid(M)
    m_pad = tm * n_tiles
    if m_pad != M:
        patches = jnp.pad(patches, ((0, m_pad - M), (0, 0)))

    Rw, LW = w_slab.shape
    Rb, _ = b_slab.shape

    packed = pl.pallas_call(
        kernel,
        out_shape=jax.ShapeDtypeStruct((m_pad, OUT_W), jnp.float32),
        grid_spec=pltpu.PrefetchScalarGridSpec(
            num_scalar_prefetch=0,
            grid=(n_tiles,),
            in_specs=[
                pl.BlockSpec((tm, PD), lambda i: (i, 0)),
                pl.BlockSpec((Rw, LW), lambda i: (0, 0)),   # VMEM-resident weight slab
                pl.BlockSpec((Rb, LW), lambda i: (0, 0)),   # VMEM-resident bias/LN slab
            ],
            out_specs=pl.BlockSpec((tm, OUT_W), lambda i: (i, 0)),
        ),
        compiler_params=pltpu.CompilerParams(
            dimension_semantics=("parallel",)),
    )(patches, w_slab, b_slab)

    F, S = FEAT_DIM, SEM_DIM
    dino_rows = packed[:M, :F]
    sem_rows = packed[:M, F:F + S]
    recon_loss = jnp.sum(packed[:M, F + S]) / jnp.float32(M * F)
    return dino_rows, sem_rows, recon_loss


# ----------------------------- layout helpers (glue) ------------------------------
def rows_to_nchw(r, N, H, W):
    C = r.shape[1]
    return jnp.transpose(r.reshape(N, H, W, C), (0, 3, 1, 2))


def patchify(img, P):
    # (N, 3, H, W) -> (N*Hp*Wp, 3*P*P), Hp, Wp
    N, C, H, W = img.shape
    Hp, Wp = H // P, W // P
    x = img.reshape(N, C, Hp, P, Wp, P)
    x = jnp.transpose(x, (0, 2, 4, 1, 3, 5))
    return x.reshape(N * Hp * Wp, C * P * P), Hp, Wp


# ----------------------------- parameter init ------------------------------------
def _init_linear(key, in_dim, out_dim):
    k1, k2 = jax.random.split(key)
    s = 1.0 / (in_dim ** 0.5)
    w = jax.random.uniform(k1, (in_dim, out_dim), minval=-s, maxval=s, dtype=jnp.float32)
    b = jax.random.uniform(k2, (1, out_dim), minval=-s, maxval=s, dtype=jnp.float32)
    return w, b


def _init_resblock(key, in_dim, out_dim):
    k1, k2, k3 = jax.random.split(key, 3)
    w1, b1 = _init_linear(k1, in_dim, out_dim)
    w2, b2 = _init_linear(k2, out_dim, out_dim)
    blk = dict(w1=w1, b1=b1, w2=w2, b2=b2)
    if in_dim != out_dim:                 # projection skip only when needed
        ws, bs = _init_linear(k3, in_dim, out_dim)
        blk["ws"], blk["bs"] = ws, bs
    return blk


def init_params(key):
    keys = jax.random.split(key, 16)
    params = {}
    ext_w, ext_b = _init_linear(keys[0], 3 * PATCH * PATCH, FEAT_DIM)
    params["ext_w"], params["ext_b"] = ext_w, ext_b
    params["sem_blocks"] = [
        _init_resblock(keys[1 + i], FEAT_DIM if i == 0 else SEM_DIM, SEM_DIM)
        for i in range(ENC_BLOCKS)
    ]
    params["loc_blocks"] = [
        _init_resblock(keys[5 + i], FEAT_DIM if i == 0 else LOC_DIM, LOC_DIM)
        for i in range(ENC_BLOCKS)
    ]
    agg_w, agg_b = _init_linear(keys[9], SEM_DIM + LOC_DIM, HID_DIM)
    params["agg_w"], params["agg_b"] = agg_w, agg_b
    params["dec_blocks"] = [
        _init_resblock(keys[10 + i], HID_DIM,
                       FEAT_DIM if i == DEC_BLOCKS - 1 else HID_DIM)
        for i in range(DEC_BLOCKS)
    ]
    params["ln_g"] = jnp.ones((1, FEAT_DIM), jnp.float32)
    params["ln_b"] = jnp.zeros((1, FEAT_DIM), jnp.float32)
    return params


# ----------------------------- DINORes forward ------------------------------------
def make_dino_res_forward(net):
    """`net` (static slab-offset metadata) is closed over; weight slabs are
    passed as arrays so packing never runs inside the jitted hot path."""
    kernel = _make_kernel(net)

    def forward(w_slab, b_slab, img, aug_key):
        B = img.shape[0]

        # _photometric_aug: per-image per-channel random scale/offset.
        k1, k2 = jax.random.split(aug_key)
        scale = jax.random.uniform(k1, (B, 3, 1, 1), minval=0.9, maxval=1.1,
                                   dtype=jnp.float32)
        offset = jax.random.uniform(k2, (B, 3, 1, 1), minval=-0.1, maxval=0.1,
                                    dtype=jnp.float32)
        img_aug_2 = img * scale + offset
        # TODO(synk): random GaussianBlur branch (prob 1/4) omitted — deterministic no-blur path.

        x = jnp.concatenate([img, img_aug_2], axis=0)           # (2B, 3, H, W)

        # extractor front-end (synthetic DinoFeaturizer: patch-embed projection)
        patches, Hp, Wp = patchify(x, PATCH)                    # (2B*Hp*Wp, 3*P*P)
        M = patches.shape[0]

        # TODO(synk): training-only CLUB-encoder optimizer step / InfoNCE / CLUB
        # losses not implemented (eval path only).

        dino_rows, sem_rows, recon_loss = fused_forward_rows(
            kernel, patches, w_slab, b_slab)

        # torch.chunk(..., 2, dim=0)[0] — rows are batch-major, so the first
        # half are the features of the un-augmented images.
        half = M // 2
        dino_feat_img1 = rows_to_nchw(dino_rows[:half], B, Hp, Wp)
        semantic_feat_img1 = rows_to_nchw(sem_rows[:half], B, Hp, Wp)

        output = {"recon-loss": recon_loss}
        return dino_feat_img1, semantic_feat_img1, output

    return jax.jit(forward)


# ----------------------------- main ------------------------------------------------
if __name__ == "__main__":
    B, H, W = 2, 16, 16
    img = jax.random.normal(jax.random.PRNGKey(0), (B, 3, H, W), dtype=jnp.float32)
    params = init_params(jax.random.PRNGKey(1))

    # Weight packing (fusions, block-diag merges, bf16 slab build) runs ONCE,
    # outside the jitted forward.
    w_slab, b_slab, net = pack_params(params)
    fwd = make_dino_res_forward(net)

    dino_feat, sem_img1, out = fwd(w_slab, b_slab, img, jax.random.PRNGKey(2))
    jax.block_until_ready((dino_feat, sem_img1, out["recon-loss"]))

    assert dino_feat.shape == (B, FEAT_DIM, H // PATCH, W // PATCH)
    assert sem_img1.shape == (B, SEM_DIM, H // PATCH, W // PATCH)
    assert out["recon-loss"].shape == ()
    assert bool(jnp.isfinite(out["recon-loss"]))
    print("KERNEL_OK")
</pallas_src>

<mosaic_0001>
module attributes {stable_mosaic.version = 11 : i64} {
  func.func @kernel(%arg0: i32, %arg1: memref<64x48xf32, #tpu.memory_space<vmem>>, %arg2: memref<480x128xbf16, #tpu.memory_space<vmem>>, %arg3: memref<16x128xf32, #tpu.memory_space<vmem>>, %arg4: memref<64x128xf32, #tpu.memory_space<vmem>>) attributes {dimension_semantics = [#tpu.dimension_semantics<parallel>], iteration_bounds = array<i64: 1>, scalar_prefetch = 0 : i64, scratch_operands = 0 : i64, tpu.core_type = #tpu.core_type<tc>, window_params = [{transform_indices = @transform_0, window_bounds = array<i64: 64, 48>}, {pipeline_mode = #tpu.pipeline_mode<synchronous>, transform_indices = @transform_1, window_bounds = array<i64: 480, 128>}, {pipeline_mode = #tpu.pipeline_mode<synchronous>, transform_indices = @transform_2, window_bounds = array<i64: 16, 128>}, {transform_indices = @transform_3, window_bounds = array<i64: 64, 128>}]} {
    %c0 = arith.constant 0 : index
    %c0_0 = arith.constant 0 : index
    %0 = vector.load %arg1[%c0, %c0_0] : memref<64x48xf32, #tpu.memory_space<vmem>>, vector<64x48xf32>
    %c0_1 = arith.constant 0 : index
    %c0_2 = arith.constant 0 : index
    %1 = vector.load %arg2[%c0_1, %c0_2] : memref<480x128xbf16, #tpu.memory_space<vmem>>, vector<48x96xbf16>
    %c0_3 = arith.constant 0 : index
    %c0_4 = arith.constant 0 : index
    %2 = vector.load %arg3[%c0_3, %c0_4] : memref<16x128xf32, #tpu.memory_space<vmem>>, vector<1x96xf32>
    %3 = arith.truncf %0 : vector<64x48xf32> to vector<64x48xbf16>
    %cst = arith.constant dense<0.000000e+00> : vector<64x96xf32>
    %4 = tpu.matmul %3, %1, %cst {dimension_numbers = #tpu.dot_dimension_numbers<[1], [0], [0], [1], [0, 0, 1, 1], [], []>} : vector<64x48xbf16>, vector<48x96xbf16>, vector<64x96xf32> -> vector<64x96xf32>
    %5 = vector.broadcast %2 : vector<1x96xf32> to vector<64x96xf32>
    %6 = arith.addf %4, %5 : vector<64x96xf32>
    %7 = vector.extract_strided_slice %6 {offsets = [0, 0], sizes = [64, 32], strides = [1, 1]} : vector<64x96xf32> to vector<64x32xf32>
    %8 = vector.extract_strided_slice %6 {offsets = [0, 32], sizes = [64, 64], strides = [1, 1]} : vector<64x96xf32> to vector<64x64xf32>
    %cst_5 = arith.constant 0.000000e+00 : f32
    %9 = vector.broadcast %cst_5 : f32 to vector<64x64xf32>
    %10 = arith.maximumf %8, %9 : vector<64x64xf32>
    %c48 = arith.constant 48 : index
    %c0_6 = arith.constant 0 : index
    %11 = vector.load %arg2[%c48, %c0_6] : memref<480x128xbf16, #tpu.memory_space<vmem>>, vector<64x64xbf16>
    %c1 = arith.constant 1 : index
    %c0_7 = arith.constant 0 : index
    %12 = vector.load %arg3[%c1, %c0_7] : memref<16x128xf32, #tpu.memory_space<vmem>>, vector<1x64xf32>
    %13 = arith.truncf %10 : vector<64x64xf32> to vector<64x64xbf16>
    %cst_8 = arith.constant dense<0.000000e+00> : vector<64x64xf32>
    %14 = tpu.matmul %13, %11, %cst_8 {dimension_numbers = #tpu.dot_dimension_numbers<[1], [0], [0], [1], [0, 0, 1, 1], [], []>} : vector<64x64xbf16>, vector<64x64xbf16>, vector<64x64xf32> -> vector<64x64xf32>
    %15 = vector.broadcast %12 : vector<1x64xf32> to vector<64x64xf32>
    %16 = arith.addf %14, %15 : vector<64x64xf32>
    %17 = tpu.concatenate %7, %7 in 1 : vector<64x32xf32>, vector<64x32xf32> -> vector<64x64xf32>
    %18 = arith.addf %16, %17 : vector<64x64xf32>
    %c112 = arith.constant 112 : index
    %c0_9 = arith.constant 0 : index
    %19 = vector.load %arg2[%c112, %c0_9] : memref<480x128xbf16, #tpu.memory_space<vmem>>, vector<64x64xbf16>
    %c2 = arith.constant 2 : index
    %c0_10 = arith.constant 0 : index
    %20 = vector.load %arg3[%c2, %c0_10] : memref<16x128xf32, #tpu.memory_space<vmem>>, vector<1x64xf32>
    %21 = arith.truncf %18 : vector<64x64xf32> to vector<64x64xbf16>
    %cst_11 = arith.constant dense<0.000000e+00> : vector<64x64xf32>
    %22 = tpu.matmul %21, %19, %cst_11 {dimension_numbers = #tpu.dot_dimension_numbers<[1], [0], [0], [1], [0, 0, 1, 1], [], []>} : vector<64x64xbf16>, vector<64x64xbf16>, vector<64x64xf32> -> vector<64x64xf32>
    %23 = vector.broadcast %20 : vector<1x64xf32> to vector<64x64xf32>
    %24 = arith.addf %22, %23 : vector<64x64xf32>
    %cst_12 = arith.constant 0.000000e+00 : f32
    %25 = vector.broadcast %cst_12 : f32 to vector<64x64xf32>
    %26 = arith.maximumf %24, %25 : vector<64x64xf32>
    %c176 = arith.constant 176 : index
    %c0_13 = arith.constant 0 : index
    %27 = vector.load %arg2[%c176, %c0_13] : memref<480x128xbf16, #tpu.memory_space<vmem>>, vector<64x64xbf16>
    %c3 = arith.constant 3 : index
    %c0_14 = arith.constant 0 : index
    %28 = vector.load %arg3[%c3, %c0_14] : memref<16x128xf32, #tpu.memory_space<vmem>>, vector<1x64xf32>
    %29 = arith.truncf %26 : vector<64x64xf32> to vector<64x64xbf16>
    %cst_15 = arith.constant dense<0.000000e+00> : vector<64x64xf32>
    %30 = tpu.matmul %29, %27, %cst_15 {dimension_numbers = #tpu.dot_dimension_numbers<[1], [0], [0], [1], [0, 0, 1, 1], [], []>} : vector<64x64xbf16>, vector<64x64xbf16>, vector<64x64xf32> -> vector<64x64xf32>
    %31 = vector.broadcast %28 : vector<1x64xf32> to vector<64x64xf32>
    %32 = arith.addf %30, %31 : vector<64x64xf32>
    %33 = arith.addf %32, %18 : vector<64x64xf32>
    %34 = vector.extract_strided_slice %33 {offsets = [0, 0], sizes = [64, 32], strides = [1, 1]} : vector<64x64xf32> to vector<64x32xf32>
    %c240 = arith.constant 240 : index
    %c0_16 = arith.constant 0 : index
    %35 = vector.load %arg2[%c240, %c0_16] : memref<480x128xbf16, #tpu.memory_space<vmem>>, vector<64x48xbf16>
    %c4 = arith.constant 4 : index
    %c0_17 = arith.constant 0 : index
    %36 = vector.load %arg3[%c4, %c0_17] : memref<16x128xf32, #tpu.memory_space<vmem>>, vector<1x48xf32>
    %37 = arith.truncf %33 : vector<64x64xf32> to vector<64x64xbf16>
    %cst_18 = arith.constant dense<0.000000e+00> : vector<64x48xf32>
    %38 = tpu.matmul %37, %35, %cst_18 {dimension_numbers = #tpu.dot_dimension_numbers<[1], [0], [0], [1], [0, 0, 1, 1], [], []>} : vector<64x64xbf16>, vector<64x48xbf16>, vector<64x48xf32> -> vector<64x48xf32>
    %39 = vector.broadcast %36 : vector<1x48xf32> to vector<64x48xf32>
    %40 = arith.addf %38, %39 : vector<64x48xf32>
    %c304 = arith.constant 304 : index
    %c0_19 = arith.constant 0 : index
    %41 = vector.load %arg2[%c304, %c0_19] : memref<480x128xbf16, #tpu.memory_space<vmem>>, vector<48x48xbf16>
    %c5 = arith.constant 5 : index
    %c0_20 = arith.constant 0 : index
    %42 = vector.load %arg3[%c5, %c0_20] : memref<16x128xf32, #tpu.memory_space<vmem>>, vector<1x48xf32>
    %43 = arith.truncf %40 : vector<64x48xf32> to vector<64x48xbf16>
    %cst_21 = arith.constant dense<0.000000e+00> : vector<64x48xf32>
    %44 = tpu.matmul %43, %41, %cst_21 {dimension_numbers = #tpu.dot_dimension_numbers<[1], [0], [0], [1], [0, 0, 1, 1], [], []>} : vector<64x48xbf16>, vector<48x48xbf16>, vector<64x48xf32> -> vector<64x48xf32>
    %45 = vector.broadcast %42 : vector<1x48xf32> to vector<64x48xf32>
    %46 = arith.addf %44, %45 : vector<64x48xf32>
    %cst_22 = arith.constant 0.000000e+00 : f32
    %47 = vector.broadcast %cst_22 : f32 to vector<64x48xf32>
    %48 = arith.maximumf %46, %47 : vector<64x48xf32>
    %c352 = arith.constant 352 : index
    %c0_23 = arith.constant 0 : index
    %49 = vector.load %arg2[%c352, %c0_23] : memref<480x128xbf16, #tpu.memory_space<vmem>>, vector<48x48xbf16>
    %c6 = arith.constant 6 : index
    %c0_24 = arith.constant 0 : index
    %50 = vector.load %arg3[%c6, %c0_24] : memref<16x128xf32, #tpu.memory_space<vmem>>, vector<1x48xf32>
    %51 = arith.truncf %48 : vector<64x48xf32> to vector<64x48xbf16>
    %cst_25 = arith.constant dense<0.000000e+00> : vector<64x48xf32>
    %52 = tpu.matmul %51, %49, %cst_25 {dimension_numbers = #tpu.dot_dimension_numbers<[1], [0], [0], [1], [0, 0, 1, 1], [], []>} : vector<64x48xbf16>, vector<48x48xbf16>, vector<64x48xf32> -> vector<64x48xf32>
    %53 = vector.broadcast %50 : vector<1x48xf32> to vector<64x48xf32>
    %54 = arith.addf %52, %53 : vector<64x48xf32>
    %55 = arith.addf %54, %40 : vector<64x48xf32>
    %c400 = arith.constant 400 : index
    %c0_26 = arith.constant 0 : index
    %56 = vector.load %arg2[%c400, %c0_26] : memref<480x128xbf16, #tpu.memory_space<vmem>>, vector<48x64xbf16>
    %c7 = arith.constant 7 : index
    %c0_27 = arith.constant 0 : index
    %57 = vector.load %arg3[%c7, %c0_27] : memref<16x128xf32, #tpu.memory_space<vmem>>, vector<1x64xf32>
    %58 = arith.truncf %55 : vector<64x48xf32> to vector<64x48xbf16>
    %cst_28 = arith.constant dense<0.000000e+00> : vector<64x64xf32>
    %59 = tpu.matmul %58, %56, %cst_28 {dimension_numbers = #tpu.dot_dimension_numbers<[1], [0], [0], [1], [0, 0, 1, 1], [], []>} : vector<64x48xbf16>, vector<48x64xbf16>, vector<64x64xf32> -> vector<64x64xf32>
    %60 = vector.broadcast %57 : vector<1x64xf32> to vector<64x64xf32>
    %61 = arith.addf %59, %60 : vector<64x64xf32>
    %62 = vector.extract_strided_slice %61 {offsets = [0, 0], sizes = [64, 32], strides = [1, 1]} : vector<64x64xf32> to vector<64x32xf32>
    %cst_29 = arith.constant 0.000000e+00 : f32
    %63 = vector.broadcast %cst_29 : f32 to vector<64x32xf32>
    %64 = arith.maximumf %62, %63 : vector<64x32xf32>
    %c448 = arith.constant 448 : index
    %c0_30 = arith.constant 0 : index
    %65 = vector.load %arg2[%c448, %c0_30] : memref<480x128xbf16, #tpu.memory_space<vmem>>, vector<32x32xbf16>
    %c8 = arith.constant 8 : index
    %c0_31 = arith.constant 0 : index
    %66 = vector.load %arg3[%c8, %c0_31] : memref<16x128xf32, #tpu.memory_space<vmem>>, vector<1x32xf32>
    %67 = arith.truncf %64 : vector<64x32xf32> to vector<64x32xbf16>
    %cst_32 = arith.constant dense<0.000000e+00> : vector<64x32xf32>
    %68 = tpu.matmul %67, %65, %cst_32 {dimension_numbers = #tpu.dot_dimension_numbers<[1], [0], [0], [1], [0, 0, 1, 1], [], []>} : vector<64x32xbf16>, vector<32x32xbf16>, vector<64x32xf32> -> vector<64x32xf32>
    %69 = vector.broadcast %66 : vector<1x32xf32> to vector<64x32xf32>
    %70 = arith.addf %68, %69 : vector<64x32xf32>
    %71 = vector.extract_strided_slice %61 {offsets = [0, 32], sizes = [64, 32], strides = [1, 1]} : vector<64x64xf32> to vector<64x32xf32>
    %72 = arith.addf %70, %71 : vector<64x32xf32>
    %c9 = arith.constant 9 : index
    %c0_33 = arith.constant 0 : index
    %73 = vector.load %arg3[%c9, %c0_33] : memref<16x128xf32, #tpu.memory_space<vmem>>, vector<1x32xf32>
    %c10 = arith.constant 10 : index
    %c0_34 = arith.constant 0 : index
    %74 = vector.load %arg3[%c10, %c0_34] : memref<16x128xf32, #tpu.memory_space<vmem>>, vector<1x32xf32>
    %cst_35 = arith.constant dense<0.000000e+00> : vector<64xf32>
    %75 = vector.multi_reduction <add>, %72, %cst_35 [1] : vector<64x32xf32> to vector<64xf32>
    %76 = vector.shape_cast %75 : vector<64xf32> to vector<64x1xf32>
    %cst_36 = arith.constant 3.200000e+01 : f32
    %77 = vector.broadcast %cst_36 : f32 to vector<64x1xf32>
    %78 = arith.divf %76, %77 : vector<64x1xf32>
    %79 = vector.broadcast %78 : vector<64x1xf32> to vector<64x32xf32>
    %80 = arith.subf %72, %79 : vector<64x32xf32>
    %81 = vector.broadcast %78 : vector<64x1xf32> to vector<64x32xf32>
    %82 = arith.subf %72, %81 : vector<64x32xf32>
    %83 = arith.mulf %80, %82 : vector<64x32xf32>
    %cst_37 = arith.constant dense<0.000000e+00> : vector<64xf32>
    %84 = vector.multi_reduction <add>, %83, %cst_37 [1] : vector<64x32xf32> to vector<64xf32>
    %85 = vector.shape_cast %84 : vector<64xf32> to vector<64x1xf32>
    %cst_38 = arith.constant 3.200000e+01 : f32
    %86 = vector.broadcast %cst_38 : f32 to vector<64x1xf32>
    %87 = arith.divf %85, %86 : vector<64x1xf32>
    %88 = vector.broadcast %78 : vector<64x1xf32> to vector<64x32xf32>
    %89 = arith.subf %72, %88 : vector<64x32xf32>
    %cst_39 = arith.constant 9.99999974E-6 : f32
    %90 = vector.broadcast %cst_39 : f32 to vector<64x1xf32>
    %91 = arith.addf %87, %90 : vector<64x1xf32>
    %92 = math.rsqrt %91 : vector<64x1xf32>
    %93 = vector.broadcast %92 : vector<64x1xf32> to vector<64x32xf32>
    %94 = arith.mulf %89, %93 : vector<64x32xf32>
    %95 = vector.broadcast %73 : vector<1x32xf32> to vector<64x32xf32>
    %96 = arith.mulf %94, %95 : vector<64x32xf32>
    %97 = vector.broadcast %74 : vector<1x32xf32> to vector<64x32xf32>
    %98 = arith.addf %96, %97 : vector<64x32xf32>
    %99 = arith.subf %98, %7 : vector<64x32xf32>
    %100 = arith.mulf %99, %99 : vector<64x32xf32>
    %cst_40 = arith.constant dense<0.000000e+00> : vector<64xf32>
    %101 = vector.multi_reduction <add>, %100, %cst_40 [1] : vector<64x32xf32> to vector<64xf32>
    %102 = vector.shape_cast %101 : vector<64xf32> to vector<64x1xf32>
    %c0_41 = arith.constant 0 : index
    %c0_42 = arith.constant 0 : index
    %103 = vector.load %arg4[%c0_41, %c0_42] : memref<64x128xf32, #tpu.memory_space<vmem>>, vector<64x32xf32>
    tpu.vector_store %arg4[%c0_41, %c0_42], %7 {strides = array<i32>} : memref<64x128xf32, #tpu.memory_space<vmem>>, vector<64x32xf32>,
    %c0_43 = arith.constant 0 : index
    %c32 = arith.constant 32 : index
    %104 = vector.load %arg4[%c0_43, %c32] : memref<64x128xf32, #tpu.memory_space<vmem>>, vector<64x32xf32>
    tpu.vector_store %arg4[%c0_43, %c32], %34 {strides = array<i32>} : memref<64x128xf32, #tpu.memory_space<vmem>>, vector<64x32xf32>,
    %c0_44 = arith.constant 0 : index
    %c64 = arith.constant 64 : index
    %105 = vector.load %arg4[%c0_44, %c64] : memref<64x128xf32, #tpu.memory_space<vmem>>, vector<64x1xf32>
    tpu.vector_store %arg4[%c0_44, %c64], %102 {strides = array<i32>} : memref<64x128xf32, #tpu.memory_space<vmem>>, vector<64x1xf32>,
    return
  }
  func.func @transform_0(%arg0: i32) -> (i32, i32) {
    %c0_i32 = arith.constant 0 : i32
    %c0_i32_0 = arith.constant 0 : i32
    return %arg0, %c0_i32 : i32, i32
  }
  func.func @transform_1(%arg0: i32) -> (i32, i32) {
    %c0_i32 = arith.constant 0 : i32
    %c0_i32_0 = arith.constant 0 : i32
    %c0_i32_1 = arith.constant 0 : i32
    return %c0_i32, %c0_i32_0 : i32, i32
  }
  func.func @transform_2(%arg0: i32) -> (i32, i32) {
    %c0_i32 = arith.constant 0 : i32
    %c0_i32_0 = arith.constant 0 : i32
    %c0_i32_1 = arith.constant 0 : i32
    return %c0_i32, %c0_i32_0 : i32, i32
  }
  func.func @transform_3(%arg0: i32) -> (i32, i32) {
    %c0_i32 = arith.constant 0 : i32
    %c0_i32_0 = arith.constant 0 : i32
    return %arg0, %c0_i32 : i32, i32
  }
}

</mosaic_0001>

<llo_original>
// kernel: forward.1
$region0: #{forward.1}
  #allocation0 [shape = 'u32[]', space=smem, size = 0x4, offset = 0x4, fixed_abs, tag = 'smem constant byte address 0x4 - core index']
  #allocation1 [shape = 'u32[144,128]{1,0:T(1,128)}', space=vmem, size = 0x12000, scoped, tag = 'internal scratch']
  %s0 = inlined_call_operand.vmem [shape: f32[64,48], index: 0, kind: input, shape index: {}]
  %s1 = inlined_call_operand.vmem [shape: bf16[480,128], index: 1, kind: input, shape index: {}]
  %s2 = inlined_call_operand.vmem [shape: f32[16,128], index: 2, kind: input, shape index: {}]
  %s3 = inlined_call_operand.vmem [shape: f32[64,128], index: 3, kind: output, shape index: {}]
  %s4 = sld [smem:[#allocation0]]
  $region22: #{forward.1} parent=0
    _
  %s6 = ssub.s32 1, %s4
  %s7 = scalar_select 0, %s6, %s4
  // Predicated region
  $region2: #{forward.1} parent=0 // pred_check
    _
  $region3: #{forward.1} parent=0 // pred_check_branch
    %9 = sbr.rel (0) target = $region5
  $region4: #{forward.1} parent=0 // pred_region
    _
  $region5: #{forward.1} parent=0 // pred_fallthru
    _
  // Predicated region
  $region6: #{forward.1} parent=0 // pred_check
    _
  $region7: #{forward.1} parent=0 // pred_check_branch
    %11 = sbr.rel (0) target = $region9
  $region8: #{forward.1} parent=0 // pred_region
    _
  $region9: #{forward.1} parent=0 // pred_fallthru
    _
  // Predicated region
  $region10: #{forward.1} parent=0 // pred_check
    _
  $region11: #{forward.1} parent=0 // pred_check_branch
    %13 = sbr.rel (0) target = $region13
  $region12: #{forward.1} parent=0 // pred_region
    _
  $region13: #{forward.1} parent=0 // pred_fallthru
    _
  %v15 = vld [vmem:[%s0] sm:$0xff]
  %v16 = vld [vmem:[%s0 + $0x8] sm:$0xff]
  %v17 = vld [vmem:[%s0 + $0x10] sm:$0xff]
  %v18 = vld [vmem:[%s0 + $0x18] sm:$0xff]
  %v19 = vld [vmem:[%s0 + $0x20] sm:$0xff]
  %v20 = vld [vmem:[%s0 + $0x28] sm:$0xff]
  %v21 = vld [vmem:[%s0 + $0x30] sm:$0xff]
  %v22 = vld [vmem:[%s0 + $0x38] sm:$0xff]
  %v23 = vld [vmem:[%s1] sm:$0xf]
  %v24 = vld [vmem:[%s1 + $0x4] sm:$0xf]
  %v25 = vld [vmem:[%s1 + $0x8] sm:$0xf]
  %v26 = vld [vmem:[%s1 + $0xc] sm:$0xf]
  %v27 = vld [vmem:[%s1 + $0x10] sm:$0xf]
  %v28 = vld [vmem:[%s1 + $0x14] sm:$0xf]
  %v29 = vld [vmem:[%s2] sm:$0x1]
  %v30 = vpack.c.bf16 %v16, %v15
  %v31 = vpack.c.bf16 %v18, %v17
  %v32 = vpack.c.bf16 %v20, %v19
  %v33 = vpack.c.bf16 %v22, %v21
  %v34 = vlaneseq
  %v35 = vshrl.u32 %v34, 7
  %v36 = vsub.s32 0, %v35
  %v37 = vrot.slane %v29, %v36
  %v44 = vunpack.c.l.b16 %v23
  %v45 = vunpack.c.l.b16 %v24
  %v46 = vunpack.c.l.b16 %v25
  %v47 = vunpack.c.l.b16 %v26
  %v48 = vunpack.c.l.b16 %v27
  %v49 = vunpack.c.l.b16 %v28
  %v50 = vpack.c.b16 %v45, %v44
  %v51 = vpack.c.b16 %v47, %v46
  %v52 = vpack.c.b16 %v49, %v48
  %vm56 = vcmask 392192
  %v58 = vsel %vm56, %v30, 0
  %v61 = vsel %vm56, %v31, 0
  %v64 = vsel %vm56, %v32, 0
  %v67 = vsel %vm56, %v33, 0
  %69 = vmatprep.subr.bf16.mxu0 0
  %70 = vmatpush1.bf16.msra.mxu0 %v50
  %71 = vmatprep.subr.bf16.mxu0 0
  %72 = vmatpush1.bf16.msra.mxu0 %v51
  %73 = vmatprep.subr.bf16.mxu0 0
  %74 = vmatpush1.bf16.msra.mxu0 %v52
  %75 = vmatprep.subr.bf16.mxu0 0
  %76 = vmatpush1.bf16.msra.mxu0 0
  %77 = vmatprep.subr.bf16.mxu0 0
  %78 = vmatpush1.bf16.msra.mxu0 0
  %79 = vmatprep.subr.bf16.mxu0 0
  %80 = vmatpush1.bf16.msra.mxu0 0
  %81 = vmatprep.subr.bf16.mxu0 0
  %82 = vmatpush1.bf16.msra.mxu0 0
  %83 = vmatprep.subr.bf16.mxu0 0
  %84 = vmatpush1.bf16.msra.mxu0 0
  %85 = vmatprep.subr.bf16.mxu0 0
  %86 = vmatpush1.bf16.msra.mxu0 0
  %87 = vmatprep.subr.bf16.mxu0 0
  %88 = vmatpush1.bf16.msra.mxu0 0
  %89 = vmatprep.subr.bf16.mxu0 0
  %90 = vmatpush1.bf16.msra.mxu0 0
  %91 = vmatprep.subr.bf16.mxu0 0
  %92 = vmatpush1.bf16.msra.mxu0 0
  %93 = vmatprep.subr.bf16.mxu0 0
  %94 = vmatpush1.bf16.msra.mxu0 0
  %95 = vmatprep.subr.bf16.mxu0 0
  %96 = vmatpush1.bf16.msra.mxu0 0
  %97 = vmatprep.subr.bf16.mxu0 0
  %98 = vmatpush1.bf16.msra.mxu0 0
  %99 = vmatprep.subr.bf16.mxu0 0
  %100 = vmatpush1.bf16.msra.mxu0 0
  %101 = vmatprep.mubr.bf16.mxu0 0
  %102 = vmatmul.mubr.bf16.gmra.mrb[0].mxu0 %v58
  %v103 = vpop.f32.mrb[0].mxu0
  %v104 = vadd.f32 %v37, %v103
  %v105 = vpop.f32.mrb[0].mxu0
  %v106 = vpop.f32.mrb[0].mxu0
  %v107 = vadd.f32 %v37, %v106
  %v108 = vpop.f32.mrb[0].mxu0
  %109 = vmatprep.mubr.bf16.mxu0 0
  %110 = vmatmul.mubr.bf16.gmra.mrb[0].mxu0 %v61
  %v111 = vpop.f32.mrb[0].mxu0
  %v112 = vadd.f32 %v37, %v111
  %v113 = vpop.f32.mrb[0].mxu0
  %v114 = vpop.f32.mrb[0].mxu0
  %v115 = vadd.f32 %v37, %v114
  %v116 = vpop.f32.mrb[0].mxu0
  %117 = vmatprep.mubr.bf16.mxu0 0
  %118 = vmatmul.mubr.bf16.gmra.mrb[0].mxu0 %v64
  %v119 = vpop.f32.mrb[0].mxu0
  %v120 = vadd.f32 %v37, %v119
  %v121 = vpop.f32.mrb[0].mxu0
  %v122 = vpop.f32.mrb[0].mxu0
  %v123 = vadd.f32 %v37, %v122
  %v124 = vpop.f32.mrb[0].mxu0
  %125 = vmatprep.mubr.bf16.mxu0 0
  %126 = vmatmul.mubr.bf16.gmra.mrb[0].mxu0 %v67
  %v127 = vpop.f32.mrb[0].mxu0
  %v128 = vadd.f32 %v37, %v127
  %v129 = vpop.f32.mrb[0].mxu0
  %v130 = vpop.f32.mrb[0].mxu0
  %v131 = vadd.f32 %v37, %v130
  %v132 = vpop.f32.mrb[0].mxu0
  %133 = vdwg.mxu0
  %v134 = vmax.f32 %v104, 0.0
  %v135 = vmax.f32 %v107, 0.0
  %v136 = vmax.f32 %v112, 0.0
  %v137 = vmax.f32 %v115, 0.0
  %v138 = vmax.f32 %v120, 0.0
  %v139 = vmax.f32 %v123, 0.0
  %v140 = vmax.f32 %v128, 0.0
  %v141 = vmax.f32 %v131, 0.0
  %v142 = vld [vmem:[%s1 + $0x18] sm:$0xf]
  %v143 = vld [vmem:[%s1 + $0x1c] sm:$0xf]
  %v144 = vld [vmem:[%s1 + $0x20] sm:$0xf]
  %v145 = vld [vmem:[%s1 + $0x24] sm:$0xf]
  %v146 = vld [vmem:[%s1 + $0x28] sm:$0xf]
  %v147 = vld [vmem:[%s1 + $0x2c] sm:$0xf]
  %v148 = vld [vmem:[%s1 + $0x30] sm:$0xf]
  %v149 = vld [vmem:[%s1 + $0x34] sm:$0xf]
  %v150 = vld [vmem:[%s2 + $0x1] sm:$0x1]
  %v151 = vpack.c.bf16 %v135, %v134
  %v152 = vpack.c.bf16 %v137, %v136
  %v153 = vpack.c.bf16 %v139, %v138
  %v154 = vpack.c.bf16 %v141, %v140
  %v155 = vlaneseq
  %v156 = vshrl.u32 %v155, 7
  %v157 = vsub.s32 0, %v156
  %v158 = vrot.slane %v150, %v157
  %163 = vrot.lane.b32.xlu0 %v151, 96
  %v164 = vpop.permute.xlu0 %163
  %165 = vrot.lane.b32.xlu0 %v152, 96
  %v166 = vpop.permute.xlu0 %165
  %167 = vrot.lane.b32.xlu0 %v153, 96
  %v168 = vpop.permute.xlu0 %167
  %169 = vrot.lane.b32.xlu0 %v154, 96
  %v170 = vpop.permute.xlu0 %169
  %v179 = vunpack.c.l.b16 %v142
  %v180 = vunpack.c.l.b16 %v143
  %v181 = vunpack.c.l.b16 %v144
  %v182 = vunpack.c.l.b16 %v145
  %v183 = vunpack.c.l.b16 %v146
  %v184 = vunpack.c.l.b16 %v147
  %v185 = vunpack.c.l.b16 %v148
  %v186 = vunpack.c.l.b16 %v149
  %v187 = vpack.c.b16 %v180, %v179
  %v188 = vpack.c.b16 %v182, %v181
  %v189 = vpack.c.b16 %v184, %v183
  %v190 = vpack.c.b16 %v186, %v185
  %vm195 = vcmask 523264
  %v197 = vsel %vm195, %v164, 0
  %v200 = vsel %vm195, %v166, 0
  %v203 = vsel %vm195, %v168, 0
  %v206 = vsel %vm195, %v170, 0
  %208 = vmatprep.subr.bf16.mxu0 0
  %209 = vmatpush1.bf16.msra.mxu0 %v187
  %210 = vmatprep.subr.bf16.mxu0 0
  %211 = vmatpush1.bf16.msra.mxu0 %v188
  %212 = vmatprep.subr.bf16.mxu0 0
  %213 = vmatpush1.bf16.msra.mxu0 %v189
  %214 = vmatprep.subr.bf16.mxu0 0
  %215 = vmatpush1.bf16.msra.mxu0 %v190
  %216 = vmatprep.subr.bf16.mxu0 0
  %217 = vmatpush1.bf16.msra.mxu0 0
  %218 = vmatprep.subr.bf16.mxu0 0
  %219 = vmatpush1.bf16.msra.mxu0 0
  %220 = vmatprep.subr.bf16.mxu0 0
  %221 = vmatpush1.bf16.msra.mxu0 0
  %222 = vmatprep.subr.bf16.mxu0 0
  %223 = vmatpush1.bf16.msra.mxu0 0
  %224 = vmatprep.subr.bf16.mxu0 0
  %225 = vmatpush1.bf16.msra.mxu0 0
  %226 = vmatprep.subr.bf16.mxu0 0
  %227 = vmatpush1.bf16.msra.mxu0 0
  %228 = vmatprep.subr.bf16.mxu0 0
  %229 = vmatpush1.bf16.msra.mxu0 0
  %230 = vmatprep.subr.bf16.mxu0 0
  %231 = vmatpush1.bf16.msra.mxu0 0
  %232 = vmatprep.subr.bf16.mxu0 0
  %233 = vmatpush1.bf16.msra.mxu0 0
  %234 = vmatprep.subr.bf16.mxu0 0
  %235 = vmatpush1.bf16.msra.mxu0 0
  %236 = vmatprep.subr.bf16.mxu0 0
  %237 = vmatpush1.bf16.msra.mxu0 0
  %238 = vmatprep.subr.bf16.mxu0 0
  %239 = vmatpush1.bf16.msra.mxu0 0
  %240 = vmatprep.mubr.bf16.mxu0 0
  %241 = vmatmul.mubr.bf16.gmra.mrb[0].mxu0 %v197
  %v242 = vpop.f32.mrb[0].mxu0
  %v243 = vadd.f32 %v158, %v242
  %v244 = vpop.f32.mrb[0].mxu0
  %v245 = vpop.f32.mrb[0].mxu0
  %v246 = vadd.f32 %v158, %v245
  %v247 = vpop.f32.mrb[0].mxu0
  %248 = vmatprep.mubr.bf16.mxu0 0
  %249 = vmatmul.mubr.bf16.gmra.mrb[0].mxu0 %v200
  %v250 = vpop.f32.mrb[0].mxu0
  %v251 = vadd.f32 %v158, %v250
  %v252 = vpop.f32.mrb[0].mxu0
  %v253 = vpop.f32.mrb[0].mxu0
  %v254 = vadd.f32 %v158, %v253
  %v255 = vpop.f32.mrb[0].mxu0
  %256 = vmatprep.mubr.bf16.mxu0 0
  %257 = vmatmul.mubr.bf16.gmra.mrb[0].mxu0 %v203
  %v258 = vpop.f32.mrb[0].mxu0
  %v259 = vadd.f32 %v158, %v258
  %v260 = vpop.f32.mrb[0].mxu0
  %v261 = vpop.f32.mrb[0].mxu0
  %v262 = vadd.f32 %v158, %v261
  %v263 = vpop.f32.mrb[0].mxu0
  %264 = vmatprep.mubr.bf16.mxu0 0
  %265 = vmatmul.mubr.bf16.gmra.mrb[0].mxu0 %v206
  %v266 = vpop.f32.mrb[0].mxu0
  %v267 = vadd.f32 %v158, %v266
  %v268 = vpop.f32.mrb[0].mxu0
  %v269 = vpop.f32.mrb[0].mxu0
  %v270 = vadd.f32 %v158, %v269
  %v271 = vpop.f32.mrb[0].mxu0
  %272 = vdwg.mxu0
  %281 = vrot.lane.b32.xlu0 %v104, 32
  %v282 = vpop.permute.xlu0 %281
  %283 = vrot.lane.b32.xlu0 %v107, 32
  %v284 = vpop.permute.xlu0 %283
  %285 = vrot.lane.b32.xlu0 %v112, 32
  %v286 = vpop.permute.xlu0 %285
  %287 = vrot.lane.b32.xlu0 %v115, 32
  %v288 = vpop.permute.xlu0 %287
  %289 = vrot.lane.b32.xlu0 %v120, 32
  %v290 = vpop.permute.xlu0 %289
  %291 = vrot.lane.b32.xlu0 %v123, 32
  %v292 = vpop.permute.xlu0 %291
  %293 = vrot.lane.b32.xlu0 %v128, 32
  %v294 = vpop.permute.xlu0 %293
  %295 = vrot.lane.b32.xlu0 %v131, 32
  %v296 = vpop.permute.xlu0 %295
  %vm305 = vcmask 261120
  %v306 = vsel %vm305, %v104, %v282
  %v307 = vsel %vm305, %v107, %v284
  %v308 = vsel %vm305, %v112, %v286
  %v309 = vsel %vm305, %v115, %v288
  %v310 = vsel %vm305, %v120, %v290
  %v311 = vsel %vm305, %v123, %v292
  %v312 = vsel %vm305, %v128, %v294
  %v313 = vsel %vm305, %v131, %v296
  %v314 = vadd.f32 %v243, %v306
  %v315 = vadd.f32 %v246, %v307
  %v316 = vadd.f32 %v251, %v308
  %v317 = vadd.f32 %v254, %v309
  %v318 = vadd.f32 %v259, %v310
  %v319 = vadd.f32 %v262, %v311
  %v320 = vadd.f32 %v267, %v312
  %v321 = vadd.f32 %v270, %v313
  %v322 = vld [vmem:[%s1 + $0x38] sm:$0xf]
  %v323 = vld [vmem:[%s1 + $0x3c] sm:$0xf]
  %v324 = vld [vmem:[%s1 + $0x40] sm:$0xf]
  %v325 = vld [vmem:[%s1 + $0x44] sm:$0xf]
  %v326 = vld [vmem:[%s1 + $0x48] sm:$0xf]
  %v327 = vld [vmem:[%s1 + $0x4c] sm:$0xf]
  %v328 = vld [vmem:[%s1 + $0x50] sm:$0xf]
  %v329 = vld [vmem:[%s1 + $0x54] sm:$0xf]
  %v330 = vld [vmem:[%s2 + $0x2] sm:$0x1]
  %v331 = vpack.c.bf16 %v315, %v314
  %v332 = vpack.c.bf16 %v317, %v316
  %v333 = vpack.c.bf16 %v319, %v318
  %v334 = vpack.c.bf16 %v321, %v320
  %v335 = vlaneseq
  %v336 = vshrl.u32 %v335, 7
  %v337 = vsub.s32 0, %v336
  %v338 = vrot.slane %v330, %v337
  %v347 = vunpack.c.l.b16 %v322
  %v348 = vunpack.c.l.b16 %v323
  %v349 = vunpack.c.l.b16 %v324
  %v350 = vunpack.c.l.b16 %v325
  %v351 = vunpack.c.l.b16 %v326
  %v352 = vunpack.c.l.b16 %v327
  %v353 = vunpack.c.l.b16 %v328
  %v354 = vunpack.c.l.b16 %v329
  %v355 = vpack.c.b16 %v348, %v347
  %v356 = vpack.c.b16 %v350, %v349
  %v357 = vpack.c.b16 %v352, %v351
  %v358 = vpack.c.b16 %v354, %v353
  %v364 = vsel %vm195, %v331, 0
  %v367 = vsel %vm195, %v332, 0
  %v370 = vsel %vm195, %v333, 0
  %v373 = vsel %vm195, %v334, 0
  %375 = vmatprep.subr.bf16.mxu0 0
  %376 = vmatpush1.bf16.msra.mxu0 %v355
  %377 = vmatprep.subr.bf16.mxu0 0
  %378 = vmatpush1.bf16.msra.mxu0 %v356
  %379 = vmatprep.subr.bf16.mxu0 0
  %380 = vmatpush1.bf16.msra.mxu0 %v357
  %381 = vmatprep.subr.bf16.mxu0 0
  %382 = vmatpush1.bf16.msra.mxu0 %v358
  %383 = vmatprep.subr.bf16.mxu0 0
  %384 = vmatpush1.bf16.msra.mxu0 0
  %385 = vmatprep.subr.bf16.mxu0 0
  %386 = vmatpush1.bf16.msra.mxu0 0
  %387 = vmatprep.subr.bf16.mxu0 0
  %388 = vmatpush1.bf16.msra.mxu0 0
  %389 = vmatprep.subr.bf16.mxu0 0
  %390 = vmatpush1.bf16.msra.mxu0 0
  %391 = vmatprep.subr.bf16.mxu0 0
  %392 = vmatpush1.bf16.msra.mxu0 0
  %393 = vmatprep.subr.bf16.mxu0 0
  %394 = vmatpush1.bf16.msra.mxu0 0
  %395 = vmatprep.subr.bf16.mxu0 0
  %396 = vmatpush1.bf16.msra.mxu0 0
  %397 = vmatprep.subr.bf16.mxu0 0
  %398 = vmatpush1.bf16.msra.mxu0 0
  %399 = vmatprep.subr.bf16.mxu0 0
  %400 = vmatpush1.bf16.msra.mxu0 0
  %401 = vmatprep.subr.bf16.mxu0 0
  %402 = vmatpush1.bf16.msra.mxu0 0
  %403 = vmatprep.subr.bf16.mxu0 0
  %404 = vmatpush1.bf16.msra.mxu0 0
  %405 = vmatprep.subr.bf16.mxu0 0
  %406 = vmatpush1.bf16.msra.mxu0 0
  %407 = vmatprep.mubr.bf16.mxu0 0
  %408 = vmatmul.mubr.bf16.gmra.mrb[0].mxu0 %v364
  %v409 = vpop.f32.mrb[0].mxu0
  %v410 = vadd.f32 %v338, %v409
  %v411 = vpop.f32.mrb[0].mxu0
  %v412 = vpop.f32.mrb[0].mxu0
  %v413 = vadd.f32 %v338, %v412
  %v414 = vpop.f32.mrb[0].mxu0
  %415 = vmatprep.mubr.bf16.mxu0 0
  %416 = vmatmul.mubr.bf16.gmra.mrb[0].mxu0 %v367
  %v417 = vpop.f32.mrb[0].mxu0
  %v418 = vadd.f32 %v338, %v417
  %v419 = vpop.f32.mrb[0].mxu0
  %v420 = vpop.f32.mrb[0].mxu0
  %v421 = vadd.f32 %v338, %v420
  %v422 = vpop.f32.mrb[0].mxu0
  %423 = vmatprep.mubr.bf16.mxu0 0
  %424 = vmatmul.mubr.bf16.gmra.mrb[0].mxu0 %v370
  %v425 = vpop.f32.mrb[0].mxu0
  %v426 = vadd.f32 %v338, %v425
  %v427 = vpop.f32.mrb[0].mxu0
  %v428 = vpop.f32.mrb[0].mxu0
  %v429 = vadd.f32 %v338, %v428
  %v430 = vpop.f32.mrb[0].mxu0
  %431 = vmatprep.mubr.bf16.mxu0 0
  %432 = vmatmul.mubr.bf16.gmra.mrb[0].mxu0 %v373
  %v433 = vpop.f32.mrb[0].mxu0
  %v434 = vadd.f32 %v338, %v433
  %v435 = vpop.f32.mrb[0].mxu0
  %v436 = vpop.f32.mrb[0].mxu0
  %v437 = vadd.f32 %v338, %v436
  %v438 = vpop.f32.mrb[0].mxu0
  %439 = vdwg.mxu0
  %v440 = vmax.f32 %v410, 0.0
  %v441 = vmax.f32 %v413, 0.0
  %v442 = vmax.f32 %v418, 0.0
  %v443 = vmax.f32 %v421, 0.0
  %v444 = vmax.f32 %v426, 0.0
  %v445 = vmax.f32 %v429, 0.0
  %v446 = vmax.f32 %v434, 0.0
  %v447 = vmax.f32 %v437, 0.0
  %v448 = vld [vmem:[%s1 + $0x58] sm:$0xf]
  %v449 = vld [vmem:[%s1 + $0x5c] sm:$0xf]
  %v450 = vld [vmem:[%s1 + $0x60] sm:$0xf]
  %v451 = vld [vmem:[%s1 + $0x64] sm:$0xf]
  %v452 = vld [vmem:[%s1 + $0x68] sm:$0xf]
  %v453 = vld [vmem:[%s1 + $0x6c] sm:$0xf]
  %v454 = vld [vmem:[%s1 + $0x70] sm:$0xf]
  %v455 = vld [vmem:[%s1 + $0x74] sm:$0xf]
  %v456 = vld [vmem:[%s2 + $0x3] sm:$0x1]
  %v457 = vpack.c.bf16 %v441, %v440
  %v458 = vpack.c.bf16 %v443, %v442
  %v459 = vpack.c.bf16 %v445, %v444
  %v460 = vpack.c.bf16 %v447, %v446
  %v461 = vlaneseq
  %v462 = vshrl.u32 %v461, 7
  %v463 = vsub.s32 0, %v462
  %v464 = vrot.slane %v456, %v463
  %v473 = vunpack.c.l.b16 %v448
  %v474 = vunpack.c.l.b16 %v449
  %v475 = vunpack.c.l.b16 %v450
  %v476 = vunpack.c.l.b16 %v451
  %v477 = vunpack.c.l.b16 %v452
  %v478 = vunpack.c.l.b16 %v453
  %v479 = vunpack.c.l.b16 %v454
  %v480 = vunpack.c.l.b16 %v455
  %v481 = vpack.c.b16 %v474, %v473
  %v482 = vpack.c.b16 %v476, %v475
  %v483 = vpack.c.b16 %v478, %v477
  %v484 = vpack.c.b16 %v480, %v479
  %v490 = vsel %vm195, %v457, 0
  %v493 = vsel %vm195, %v458, 0
  %v496 = vsel %vm195, %v459, 0
  %v499 = vsel %vm195, %v460, 0
  %501 = vmatprep.subr.bf16.mxu0 0
  %502 = vmatpush1.bf16.msra.mxu0 %v481
  %503 = vmatprep.subr.bf16.mxu0 0
  %504 = vmatpush1.bf16.msra.mxu0 %v482
  %505 = vmatprep.subr.bf16.mxu0 0
  %506 = vmatpush1.bf16.msra.mxu0 %v483
  %507 = vmatprep.subr.bf16.mxu0 0
  %508 = vmatpush1.bf16.msra.mxu0 %v484
  %509 = vmatprep.subr.bf16.mxu0 0
  %510 = vmatpush1.bf16.msra.mxu0 0
  %511 = vmatprep.subr.bf16.mxu0 0
  %512 = vmatpush1.bf16.msra.mxu0 0
  %513 = vmatprep.subr.bf16.mxu0 0
  %514 = vmatpush1.bf16.msra.mxu0 0
  %515 = vmatprep.subr.bf16.mxu0 0
  %516 = vmatpush1.bf16.msra.mxu0 0
  %517 = vmatprep.subr.bf16.mxu0 0
  %518 = vmatpush1.bf16.msra.mxu0 0
  %519 = vmatprep.subr.bf16.mxu0 0
  %520 = vmatpush1.bf16.msra.mxu0 0
  %521 = vmatprep.subr.bf16.mxu0 0
  %522 = vmatpush1.bf16.msra.mxu0 0
  %523 = vmatprep.subr.bf16.mxu0 0
  %524 = vmatpush1.bf16.msra.mxu0 0
  %525 = vmatprep.subr.bf16.mxu0 0
  %526 = vmatpush1.bf16.msra.mxu0 0
  %527 = vmatprep.subr.bf16.mxu0 0
  %528 = vmatpush1.bf16.msra.mxu0 0
  %529 = vmatprep.subr.bf16.mxu0 0
  %530 = vmatpush1.bf16.msra.mxu0 0
  %531 = vmatprep.subr.bf16.mxu0 0
  %532 = vmatpush1.bf16.msra.mxu0 0
  %533 = vmatprep.mubr.bf16.mxu0 0
  %534 = vmatmul.mubr.bf16.gmra.mrb[0].mxu0 %v490
  %v535 = vpop.f32.mrb[0].mxu0
  %v536 = vadd.f32 %v464, %v535
  %v537 = vpop.f32.mrb[0].mxu0
  %v538 = vpop.f32.mrb[0].mxu0
  %v539 = vadd.f32 %v464, %v538
  %v540 = vpop.f32.mrb[0].mxu0
  %541 = vmatprep.mubr.bf16.mxu0 0
  %542 = vmatmul.mubr.bf16.gmra.mrb[0].mxu0 %v493
  %v543 = vpop.f32.mrb[0].mxu0
  %v544 = vadd.f32 %v464, %v543
  %v545 = vpop.f32.mrb[0].mxu0
  %v546 = vpop.f32.mrb[0].mxu0
  %v547 = vadd.f32 %v464, %v546
  %v548 = vpop.f32.mrb[0].mxu0
  %549 = vmatprep.mubr.bf16.mxu0 0
  %550 = vmatmul.mubr.bf16.gmra.mrb[0].mxu0 %v496
  %v551 = vpop.f32.mrb[0].mxu0
  %v552 = vadd.f32 %v464, %v551
  %v553 = vpop.f32.mrb[0].mxu0
  %v554 = vpop.f32.mrb[0].mxu0
  %v555 = vadd.f32 %v464, %v554
  %v556 = vpop.f32.mrb[0].mxu0
  %557 = vmatprep.mubr.bf16.mxu0 0
  %558 = vmatmul.mubr.bf16.gmra.mrb[0].mxu0 %v499
  %v559 = vpop.f32.mrb[0].mxu0
  %v560 = vadd.f32 %v464, %v559
  %v561 = vpop.f32.mrb[0].mxu0
  %v562 = vpop.f32.mrb[0].mxu0
  %v563 = vadd.f32 %v464, %v562
  %v564 = vpop.f32.mrb[0].mxu0
  %565 = vdwg.mxu0
  %v566 = vadd.f32 %v536, %v314
  %v567 = vadd.f32 %v539, %v315
  %v568 = vadd.f32 %v544, %v316
  %v569 = vadd.f32 %v547, %v317
  %v570 = vadd.f32 %v552, %v318
  %v571 = vadd.f32 %v555, %v319
  %v572 = vadd.f32 %v560, %v320
  %v573 = vadd.f32 %v563, %v321
  %v574 = vld [vmem:[%s1 + $0x78] sm:$0xf]
  %v575 = vld [vmem:[%s1 + $0x7c] sm:$0xf]
  %v576 = vld [vmem:[%s1 + $0x80] sm:$0xf]
  %v577 = vld [vmem:[%s1 + $0x84] sm:$0xf]
  %v578 = vld [vmem:[%s1 + $0x88] sm:$0xf]
  %v579 = vld [vmem:[%s1 + $0x8c] sm:$0xf]
  %v580 = vld [vmem:[%s1 + $0x90] sm:$0xf]
  %v581 = vld [vmem:[%s1 + $0x94] sm:$0xf]
  %v582 = vld [vmem:[%s2 + $0x4] sm:$0x1]
  %v583 = vpack.c.bf16 %v567, %v566
  %v584 = vpack.c.bf16 %v569, %v568
  %v585 = vpack.c.bf16 %v571, %v570
  %v586 = vpack.c.bf16 %v573, %v572
  %v587 = vlaneseq
  %v588 = vshrl.u32 %v587, 7
  %v589 = vsub.s32 0, %v588
  %v590 = vrot.slane %v582, %v589
  %v599 = vunpack.c.l.b16 %v574
  %v600 = vunpack.c.l.b16 %v575
  %v601 = vunpack.c.l.b16 %v576
  %v602 = vunpack.c.l.b16 %v577
  %v603 = vunpack.c.l.b16 %v578
  %v604 = vunpack.c.l.b16 %v579
  %v605 = vunpack.c.l.b16 %v580
  %v606 = vunpack.c.l.b16 %v581
  %v607 = vpack.c.b16 %v600, %v599
  %v608 = vpack.c.b16 %v602, %v601
  %v609 = vpack.c.b16 %v604, %v603
  %v610 = vpack.c.b16 %v606, %v605
  %v616 = vsel %vm195, %v583, 0
  %v619 = vsel %vm195, %v584, 0
  %v622 = vsel %vm195, %v585, 0
  %v625 = vsel %vm195, %v586, 0
  %627 = vmatprep.subr.bf16.mxu0 0
  %628 = vmatpush1.bf16.msra.mxu0 %v607
  %629 = vmatprep.subr.bf16.mxu0 0
  %630 = vmatpush1.bf16.msra.mxu0 %v608
  %631 = vmatprep.subr.bf16.mxu0 0
  %632 = vmatpush1.bf16.msra.mxu0 %v609
  %633 = vmatprep.subr.bf16.mxu0 0
  %634 = vmatpush1.bf16.msra.mxu0 %v610
  %635 = vmatprep.subr.bf16.mxu0 0
  %636 = vmatpush1.bf16.msra.mxu0 0
  %637 = vmatprep.subr.bf16.mxu0 0
  %638 = vmatpush1.bf16.msra.mxu0 0
  %639 = vmatprep.subr.bf16.mxu0 0
  %640 = vmatpush1.bf16.msra.mxu0 0
  %641 = vmatprep.subr.bf16.mxu0 0
  %642 = vmatpush1.bf16.msra.mxu0 0
  %643 = vmatprep.subr.bf16.mxu0 0
  %644 = vmatpush1.bf16.msra.mxu0 0
  %645 = vmatprep.subr.bf16.mxu0 0
  %646 = vmatpush1.bf16.msra.mxu0 0
  %647 = vmatprep.subr.bf16.mxu0 0
  %648 = vmatpush1.bf16.msra.mxu0 0
  %649 = vmatprep.subr.bf16.mxu0 0
  %650 = vmatpush1.bf16.msra.mxu0 0
  %651 = vmatprep.subr.bf16.mxu0 0
  %652 = vmatpush1.bf16.msra.mxu0 0
  %653 = vmatprep.subr.bf16.mxu0 0
  %654 = vmatpush1.bf16.msra.mxu0 0
  %655 = vmatprep.subr.bf16.mxu0 0
  %656 = vmatpush1.bf16.msra.mxu0 0
  %657 = vmatprep.subr.bf16.mxu0 0
  %658 = vmatpush1.bf16.msra.mxu0 0
  %659 = vmatprep.mubr.bf16.mxu0 0
  %660 = vmatmul.mubr.bf16.gmra.mrb[0].mxu0 %v616
  %v661 = vpop.f32.mrb[0].mxu0
  %v662 = vadd.f32 %v590, %v661
  %v663 = vpop.f32.mrb[0].mxu0
  %v664 = vpop.f32.mrb[0].mxu0
  %v665 = vadd.f32 %v590, %v664
  %v666 = vpop.f32.mrb[0].mxu0
  %667 = vmatprep.mubr.bf16.mxu0 0
  %668 = vmatmul.mubr.bf16.gmra.mrb[0].mxu0 %v619
  %v669 = vpop.f32.mrb[0].mxu0
  %v670 = vadd.f32 %v590, %v669
  %v671 = vpop.f32.mrb[0].mxu0
  %v672 = vpop.f32.mrb[0].mxu0
  %v673 = vadd.f32 %v590, %v672
  %v674 = vpop.f32.mrb[0].mxu0
  %675 = vmatprep.mubr.bf16.mxu0 0
  %676 = vmatmul.mubr.bf16.gmra.mrb[0].mxu0 %v622
  %v677 = vpop.f32.mrb[0].mxu0
  %v678 = vadd.f32 %v590, %v677
  %v679 = vpop.f32.mrb[0].mxu0
  %v680 = vpop.f32.mrb[0].mxu0
  %v681 = vadd.f32 %v590, %v680
  %v682 = vpop.f32.mrb[0].mxu0
  %683 = vmatprep.mubr.bf16.mxu0 0
  %684 = vmatmul.mubr.bf16.gmra.mrb[0].mxu0 %v625
  %v685 = vpop.f32.mrb[0].mxu0
  %v686 = vadd.f32 %v590, %v685
  %v687 = vpop.f32.mrb[0].mxu0
  %v688 = vpop.f32.mrb[0].mxu0
  %v689 = vadd.f32 %v590, %v688
  %v690 = vpop.f32.mrb[0].mxu0
  %691 = vdwg.mxu0
  %v692 = vld [vmem:[%s1 + $0x98] sm:$0xf]
  %v693 = vld [vmem:[%s1 + $0x9c] sm:$0xf]
  %v694 = vld [vmem:[%s1 + $0xa0] sm:$0xf]
  %v695 = vld [vmem:[%s1 + $0xa4] sm:$0xf]
  %v696 = vld [vmem:[%s1 + $0xa8] sm:$0xf]
  %v697 = vld [vmem:[%s1 + $0xac] sm:$0xf]
  %v698 = vld [vmem:[%s2 + $0x5] sm:$0x1]
  %v699 = vpack.c.bf16 %v665, %v662
  %v700 = vpack.c.bf16 %v673, %v670
  %v701 = vpack.c.bf16 %v681, %v678
  %v702 = vpack.c.bf16 %v689, %v686
  %v703 = vlaneseq
  %v704 = vshrl.u32 %v703, 7
  %v705 = vsub.s32 0, %v704
  %v706 = vrot.slane %v698, %v705
  %v713 = vunpack.c.l.b16 %v692
  %v714 = vunpack.c.l.b16 %v693
  %v715 = vunpack.c.l.b16 %v694
  %v716 = vunpack.c.l.b16 %v695
  %v717 = vunpack.c.l.b16 %v696
  %v718 = vunpack.c.l.b16 %v697
  %v719 = vpack.c.b16 %v714, %v713
  %v720 = vpack.c.b16 %v716, %v715
  %v721 = vpack.c.b16 %v718, %v717
  %v726 = vsel %vm56, %v699, 0
  %v729 = vsel %vm56, %v700, 0
  %v732 = vsel %vm56, %v701, 0
  %v735 = vsel %vm56, %v702, 0
  %737 = vmatprep.subr.bf16.mxu0 0
  %738 = vmatpush1.bf16.msra.mxu0 %v719
  %739 = vmatprep.subr.bf16.mxu0 0
  %740 = vmatpush1.bf16.msra.mxu0 %v720
  %741 = vmatprep.subr.bf16.mxu0 0
  %742 = vmatpush1.bf16.msra.mxu0 %v721
  %743 = vmatprep.subr.bf16.mxu0 0
  %744 = vmatpush1.bf16.msra.mxu0 0
  %745 = vmatprep.subr.bf16.mxu0 0
  %746 = vmatpush1.bf16.msra.mxu0 0
  %747 = vmatprep.subr.bf16.mxu0 0
  %748 = vmatpush1.bf16.msra.mxu0 0
  %749 = vmatprep.subr.bf16.mxu0 0
  %750 = vmatpush1.bf16.msra.mxu0 0
  %751 = vmatprep.subr.bf16.mxu0 0
  %752 = vmatpush1.bf16.msra.mxu0 0
  %753 = vmatprep.subr.bf16.mxu0 0
  %754 = vmatpush1.bf16.msra.mxu0 0
  %755 = vmatprep.subr.bf16.mxu0 0
  %756 = vmatpush1.bf16.msra.mxu0 0
  %757 = vmatprep.subr.bf16.mxu0 0
  %758 = vmatpush1.bf16.msra.mxu0 0
  %759 = vmatprep.subr.bf16.mxu0 0
  %760 = vmatpush1.bf16.msra.mxu0 0
  %761 = vmatprep.subr.bf16.mxu0 0
  %762 = vmatpush1.bf16.msra.mxu0 0
  %763 = vmatprep.subr.bf16.mxu0 0
  %764 = vmatpush1.bf16.msra.mxu0 0
  %765 = vmatprep.subr.bf16.mxu0 0
  %766 = vmatpush1.bf16.msra.mxu0 0
  %767 = vmatprep.subr.bf16.mxu0 0
  %768 = vmatpush1.bf16.msra.mxu0 0
  %769 = vmatprep.mubr.bf16.mxu0 0
  %770 = vmatmul.mubr.bf16.gmra.mrb[0].mxu0 %v726
  %v771 = vpop.f32.mrb[0].mxu0
  %v772 = vadd.f32 %v706, %v771
  %v773 = vpop.f32.mrb[0].mxu0
  %v774 = vpop.f32.mrb[0].mxu0
  %v775 = vadd.f32 %v706, %v774
  %v776 = vpop.f32.mrb[0].mxu0
  %777 = vmatprep.mubr.bf16.mxu0 0
  %778 = vmatmul.mubr.bf16.gmra.mrb[0].mxu0 %v729
  %v779 = vpop.f32.mrb[0].mxu0
  %v780 = vadd.f32 %v706, %v779
  %v781 = vpop.f32.mrb[0].mxu0
  %v782 = vpop.f32.mrb[0].mxu0
  %v783 = vadd.f32 %v706, %v782
  %v784 = vpop.f32.mrb[0].mxu0
  %785 = vmatprep.mubr.bf16.mxu0 0
  %786 = vmatmul.mubr.bf16.gmra.mrb[0].mxu0 %v732
  %v787 = vpop.f32.mrb[0].mxu0
  %v788 = vadd.f32 %v706, %v787
  %v789 = vpop.f32.mrb[0].mxu0
  %v790 = vpop.f32.mrb[0].mxu0
  %v791 = vadd.f32 %v706, %v790
  %v792 = vpop.f32.mrb[0].mxu0
  %793 = vmatprep.mubr.bf16.mxu0 0
  %794 = vmatmul.mubr.bf16.gmra.mrb[0].mxu0 %v735
  %v795 = vpop.f32.mrb[0].mxu0
  %v796 = vadd.f32 %v706, %v795
  %v797 = vpop.f32.mrb[0].mxu0
  %v798 = vpop.f32.mrb[0].mxu0
  %v799 = vadd.f32 %v706, %v798
  %v800 = vpop.f32.mrb[0].mxu0
  %801 = vdwg.mxu0
  %v802 = vmax.f32 %v772, 0.0
  %v803 = vmax.f32 %v775, 0.0
  %v804 = vmax.f32 %v780, 0.0
  %v805 = vmax.f32 %v783, 0.0
  %v806 = vmax.f32 %v788, 0.0
  %v807 = vmax.f32 %v791, 0.0
  %v808 = vmax.f32 %v796, 0.0
  %v809 = vmax.f32 %v799, 0.0
  %v810 = vld [vmem:[%s1 + $0xb0] sm:$0xf]
  %v811 = vld [vmem:[%s1 + $0xb4] sm:$0xf]
  %v812 = vld [vmem:[%s1 + $0xb8] sm:$0xf]
  %v813 = vld [vmem:[%s1 + $0xbc] sm:$0xf]
  %v814 = vld [vmem:[%s1 + $0xc0] sm:$0xf]
  %v815 = vld [vmem:[%s1 + $0xc4] sm:$0xf]
  %v816 = vld [vmem:[%s2 + $0x6] sm:$0x1]
  %v817 = vpack.c.bf16 %v803, %v802
  %v818 = vpack.c.bf16 %v805, %v804
  %v819 = vpack.c.bf16 %v807, %v806
  %v820 = vpack.c.bf16 %v809, %v808
  %v821 = vlaneseq
  %v822 = vshrl.u32 %v821, 7
  %v823 = vsub.s32 0, %v822
  %v824 = vrot.slane %v816, %v823
  %v831 = vunpack.c.l.b16 %v810
  %v832 = vunpack.c.l.b16 %v811
  %v833 = vunpack.c.l.b16 %v812
  %v834 = vunpack.c.l.b16 %v813
  %v835 = vunpack.c.l.b16 %v814
  %v836 = vunpack.c.l.b16 %v815
  %v837 = vpack.c.b16 %v832, %v831
  %v838 = vpack.c.b16 %v834, %v833
  %v839 = vpack.c.b16 %v836, %v835
  %v844 = vsel %vm56, %v817, 0
  %v847 = vsel %vm56, %v818, 0
  %v850 = vsel %vm56, %v819, 0
  %v853 = vsel %vm56, %v820, 0
  %855 = vmatprep.subr.bf16.mxu0 0
  %856 = vmatpush1.bf16.msra.mxu0 %v837
  %857 = vmatprep.subr.bf16.mxu0 0
  %858 = vmatpush1.bf16.msra.mxu0 %v838
  %859 = vmatprep.subr.bf16.mxu0 0
  %860 = vmatpush1.bf16.msra.mxu0 %v839
  %861 = vmatprep.subr.bf16.mxu0 0
  %862 = vmatpush1.bf16.msra.mxu0 0
  %863 = vmatprep.subr.bf16.mxu0 0
  %864 = vmatpush1.bf16.msra.mxu0 0
  %865 = vmatprep.subr.bf16.mxu0 0
  %866 = vmatpush1.bf16.msra.mxu0 0
  %867 = vmatprep.subr.bf16.mxu0 0
  %868 = vmatpush1.bf16.msra.mxu0 0
  %869 = vmatprep.subr.bf16.mxu0 0
  %870 = vmatpush1.bf16.msra.mxu0 0
  %871 = vmatprep.subr.bf16.mxu0 0
  %872 = vmatpush1.bf16.msra.mxu0 0
  %873 = vmatprep.subr.bf16.mxu0 0
  %874 = vmatpush1.bf16.msra.mxu0 0
  %875 = vmatprep.subr.bf16.mxu0 0
  %876 = vmatpush1.bf16.msra.mxu0 0
  %877 = vmatprep.subr.bf16.mxu0 0
  %878 = vmatpush1.bf16.msra.mxu0 0
  %879 = vmatprep.subr.bf16.mxu0 0
  %880 = vmatpush1.bf16.msra.mxu0 0
  %881 = vmatprep.subr.bf16.mxu0 0
  %882 = vmatpush1.bf16.msra.mxu0 0
  %883 = vmatprep.subr.bf16.mxu0 0
  %884 = vmatpush1.bf16.msra.mxu0 0
  %885 = vmatprep.subr.bf16.mxu0 0
  %886 = vmatpush1.bf16.msra.mxu0 0
  %887 = vmatprep.mubr.bf16.mxu0 0
  %888 = vmatmul.mubr.bf16.gmra.mrb[0].mxu0 %v844
  %v889 = vpop.f32.mrb[0].mxu0
  %v890 = vadd.f32 %v824, %v889
  %v891 = vpop.f32.mrb[0].mxu0
  %v892 = vpop.f32.mrb[0].mxu0
  %v893 = vadd.f32 %v824, %v892
  %v894 = vpop.f32.mrb[0].mxu0
  %895 = vmatprep.mubr.bf16.mxu0 0
  %896 = vmatmul.mubr.bf16.gmra.mrb[0].mxu0 %v847
  %v897 = vpop.f32.mrb[0].mxu0
  %v898 = vadd.f32 %v824, %v897
  %v899 = vpop.f32.mrb[0].mxu0
  %v900 = vpop.f32.mrb[0].mxu0
  %v901 = vadd.f32 %v824, %v900
  %v902 = vpop.f32.mrb[0].mxu0
  %903 = vmatprep.mubr.bf16.mxu0 0
  %904 = vmatmul.mubr.bf16.gmra.mrb[0].mxu0 %v850
  %v905 = vpop.f32.mrb[0].mxu0
  %v906 = vadd.f32 %v824, %v905
  %v907 = vpop.f32.mrb[0].mxu0
  %v908 = vpop.f32.mrb[0].mxu0
  %v909 = vadd.f32 %v824, %v908
  %v910 = vpop.f32.mrb[0].mxu0
  %911 = vmatprep.mubr.bf16.mxu0 0
  %912 = vmatmul.mubr.bf16.gmra.mrb[0].mxu0 %v853
  %v913 = vpop.f32.mrb[0].mxu0
  %v914 = vadd.f32 %v824, %v913
  %v915 = vpop.f32.mrb[0].mxu0
  %v916 = vpop.f32.mrb[0].mxu0
  %v917 = vadd.f32 %v824, %v916
  %v918 = vpop.f32.mrb[0].mxu0
  %919 = vdwg.mxu0
  %v920 = vadd.f32 %v890, %v662
  %v921 = vadd.f32 %v893, %v665
  %v922 = vadd.f32 %v898, %v670
  %v923 = vadd.f32 %v901, %v673
  %v924 = vadd.f32 %v906, %v678
  %v925 = vadd.f32 %v909, %v681
  %v926 = vadd.f32 %v914, %v686
  %v927 = vadd.f32 %v917, %v689
  %v928 = vld [vmem:[%s1 + $0xc8] sm:$0xf]
  %v929 = vld [vmem:[%s1 + $0xcc] sm:$0xf]
  %v930 = vld [vmem:[%s1 + $0xd0] sm:$0xf]
  %v931 = vld [vmem:[%s1 + $0xd4] sm:$0xf]
  %v932 = vld [vmem:[%s1 + $0xd8] sm:$0xf]
  %v933 = vld [vmem:[%s1 + $0xdc] sm:$0xf]
  %v934 = vld [vmem:[%s2 + $0x7] sm:$0x1]
  %v935 = vpack.c.bf16 %v921, %v920
  %v936 = vpack.c.bf16 %v923, %v922
  %v937 = vpack.c.bf16 %v925, %v924
  %v938 = vpack.c.bf16 %v927, %v926
  %v939 = vlaneseq
  %v940 = vshrl.u32 %v939, 7
  %v941 = vsub.s32 0, %v940
  %v942 = vrot.slane %v934, %v941
  %v949 = vunpack.c.l.b16 %v928
  %v950 = vunpack.c.l.b16 %v929
  %v951 = vunpack.c.l.b16 %v930
  %v952 = vunpack.c.l.b16 %v931
  %v953 = vunpack.c.l.b16 %v932
  %v954 = vunpack.c.l.b16 %v933
  %v955 = vpack.c.b16 %v950, %v949
  %v956 = vpack.c.b16 %v952, %v951
  %v957 = vpack.c.b16 %v954, %v953
  %v962 = vsel %vm56, %v935, 0
  %v965 = vsel %vm56, %v936, 0
  %v968 = vsel %vm56, %v937, 0
  %v971 = vsel %vm56, %v938, 0
  %973 = vmatprep.subr.bf16.mxu0 0
  %974 = vmatpush1.bf16.msra.mxu0 %v955
  %975 = vmatprep.subr.bf16.mxu0 0
  %976 = vmatpush1.bf16.msra.mxu0 %v956
  %977 = vmatprep.subr.bf16.mxu0 0
  %978 = vmatpush1.bf16.msra.mxu0 %v957
  %979 = vmatprep.subr.bf16.mxu0 0
  %980 = vmatpush1.bf16.msra.mxu0 0
  %981 = vmatprep.subr.bf16.mxu0 0
  %982 = vmatpush1.bf16.msra.mxu0 0
  %983 = vmatprep.subr.bf16.mxu0 0
  %984 = vmatpush1.bf16.msra.mxu0 0
  %985 = vmatprep.subr.bf16.mxu0 0
  %986 = vmatpush1.bf16.msra.mxu0 0
  %987 = vmatprep.subr.bf16.mxu0 0
  %988 = vmatpush1.bf16.msra.mxu0 0
  %989 = vmatprep.subr.bf16.mxu0 0
  %990 = vmatpush1.bf16.msra.mxu0 0
  %991 = vmatprep.subr.bf16.mxu0 0
  %992 = vmatpush1.bf16.msra.mxu0 0
  %993 = vmatprep.subr.bf16.mxu0 0
  %994 = vmatpush1.bf16.msra.mxu0 0
  %995 = vmatprep.subr.bf16.mxu0 0
  %996 = vmatpush1.bf16.msra.mxu0 0
  %997 = vmatprep.subr.bf16.mxu0 0
  %998 = vmatpush1.bf16.msra.mxu0 0
  %999 = vmatprep.subr.bf16.mxu0 0
  %1000 = vmatpush1.bf16.msra.mxu0 0
  %1001 = vmatprep.subr.bf16.mxu0 0
  %1002 = vmatpush1.bf16.msra.mxu0 0
  %1003 = vmatprep.subr.bf16.mxu0 0
  %1004 = vmatpush1.bf16.msra.mxu0 0
  %1005 = vmatprep.mubr.bf16.mxu0 0
  %1006 = vmatmul.mubr.bf16.gmra.mrb[0].mxu0 %v962
  %v1007 = vpop.f32.mrb[0].mxu0
  %v1008 = vadd.f32 %v942, %v1007
  %v1009 = vpop.f32.mrb[0].mxu0
  %v1010 = vpop.f32.mrb[0].mxu0
  %v1011 = vadd.f32 %v942, %v1010
  %v1012 = vpop.f32.mrb[0].mxu0
  %1013 = vmatprep.mubr.bf16.mxu0 0
  %1014 = vmatmul.mubr.bf16.gmra.mrb[0].mxu0 %v965
  %v1015 = vpop.f32.mrb[0].mxu0
  %v1016 = vadd.f32 %v942, %v1015
  %v1017 = vpop.f32.mrb[0].mxu0
  %v1018 = vpop.f32.mrb[0].mxu0
  %v1019 = vadd.f32 %v942, %v1018
  %v1020 = vpop.f32.mrb[0].mxu0
  %1021 = vmatprep.mubr.bf16.mxu0 0
  %1022 = vmatmul.mubr.bf16.gmra.mrb[0].mxu0 %v968
  %v1023 = vpop.f32.mrb[0].mxu0
  %v1024 = vadd.f32 %v942, %v1023
  %v1025 = vpop.f32.mrb[0].mxu0
  %v1026 = vpop.f32.mrb[0].mxu0
  %v1027 = vadd.f32 %v942, %v1026
  %v1028 = vpop.f32.mrb[0].mxu0
  %1029 = vmatprep.mubr.bf16.mxu0 0
  %1030 = vmatmul.mubr.bf16.gmra.mrb[0].mxu0 %v971
  %v1031 = vpop.f32.mrb[0].mxu0
  %v1032 = vadd.f32 %v942, %v1031
  %v1033 = vpop.f32.mrb[0].mxu0
  %v1034 = vpop.f32.mrb[0].mxu0
  %v1035 = vadd.f32 %v942, %v1034
  %v1036 = vpop.f32.mrb[0].mxu0
  %1037 = vdwg.mxu0
  %v1038 = vmax.f32 %v1008, 0.0
  %v1039 = vmax.f32 %v1011, 0.0
  %v1040 = vmax.f32 %v1016, 0.0
  %v1041 = vmax.f32 %v1019, 0.0
  %v1042 = vmax.f32 %v1024, 0.0
  %v1043 = vmax.f32 %v1027, 0.0
  %v1044 = vmax.f32 %v1032, 0.0
  %v1045 = vmax.f32 %v1035, 0.0
  %v1046 = vld [vmem:[%s1 + $0xe0] sm:$0xf]
  %v1047 = vld [vmem:[%s1 + $0xe4] sm:$0xf]
  %v1048 = vld [vmem:[%s1 + $0xe8] sm:$0xf]
  %v1049 = vld [vmem:[%s1 + $0xec] sm:$0xf]
  %v1050 = vld [vmem:[%s2 + $0x8] sm:$0x1]
  %v1051 = vpack.c.bf16 %v1039, %v1038
  %v1052 = vpack.c.bf16 %v1041, %v1040
  %v1053 = vpack.c.bf16 %v1043, %v1042
  %v1054 = vpack.c.bf16 %v1045, %v1044
  %v1055 = vlaneseq
  %v1056 = vshrl.u32 %v1055, 7
  %v1057 = vsub.s32 0, %v1056
  %v1058 = vrot.slane %v1050, %v1057
  %v1063 = vunpack.c.l.b16 %v1046
  %v1064 = vunpack.c.l.b16 %v1047
  %v1065 = vunpack.c.l.b16 %v1048
  %v1066 = vunpack.c.l.b16 %v1049
  %v1067 = vpack.c.b16 %v1064, %v1063
  %v1068 = vpack.c.b16 %v1066, %v1065
  %v1072 = vsel %vm305, %v1051, 0
  %v1075 = vsel %vm305, %v1052, 0
  %v1078 = vsel %vm305, %v1053, 0
  %v1081 = vsel %vm305, %v1054, 0
  %1083 = vmatprep.subr.bf16.mxu0 0
  %1084 = vmatpush1.bf16.msra.mxu0 %v1067
  %1085 = vmatprep.subr.bf16.mxu0 0
  %1086 = vmatpush1.bf16.msra.mxu0 %v1068
  %1087 = vmatprep.subr.bf16.mxu0 0
  %1088 = vmatpush1.bf16.msra.mxu0 0
  %1089 = vmatprep.subr.bf16.mxu0 0
  %1090 = vmatpush1.bf16.msra.mxu0 0
  %1091 = vmatprep.subr.bf16.mxu0 0
  %1092 = vmatpush1.bf16.msra.mxu0 0
  %1093 = vmatprep.subr.bf16.mxu0 0
  %1094 = vmatpush1.bf16.msra.mxu0 0
  %1095 = vmatprep.subr.bf16.mxu0 0
  %1096 = vmatpush1.bf16.msra.mxu0 0
  %1097 = vmatprep.subr.bf16.mxu0 0
  %1098 = vmatpush1.bf16.msra.mxu0 0
  %1099 = vmatprep.subr.bf16.mxu0 0
  %1100 = vmatpush1.bf16.msra.mxu0 0
  %1101 = vmatprep.subr.bf16.mxu0 0
  %1102 = vmatpush1.bf16.msra.mxu0 0
  %1103 = vmatprep.subr.bf16.mxu0 0
  %1104 = vmatpush1.bf16.msra.mxu0 0
  %1105 = vmatprep.subr.bf16.mxu0 0
  %1106 = vmatpush1.bf16.msra.mxu0 0
  %1107 = vmatprep.subr.bf16.mxu0 0
  %1108 = vmatpush1.bf16.msra.mxu0 0
  %1109 = vmatprep.subr.bf16.mxu0 0
  %1110 = vmatpush1.bf16.msra.mxu0 0
  %1111 = vmatprep.subr.bf16.mxu0 0
  %1112 = vmatpush1.bf16.msra.mxu0 0
  %1113 = vmatprep.subr.bf16.mxu0 0
  %1114 = vmatpush1.bf16.msra.mxu0 0
  %1115 = vmatprep.mubr.bf16.mxu0 0
  %1116 = vmatmul.mubr.bf16.gmra.mrb[0].mxu0 %v1072
  %v1117 = vpop.f32.mrb[0].mxu0
  %v1118 = vadd.f32 %v1058, %v1117
  %v1119 = vpop.f32.mrb[0].mxu0
  %v1120 = vpop.f32.mrb[0].mxu0
  %v1121 = vadd.f32 %v1058, %v1120
  %v1122 = vpop.f32.mrb[0].mxu0
  %1123 = vmatprep.mubr.bf16.mxu0 0
  %1124 = vmatmul.mubr.bf16.gmra.mrb[0].mxu0 %v1075
  %v1125 = vpop.f32.mrb[0].mxu0
  %v1126 = vadd.f32 %v1058, %v1125
  %v1127 = vpop.f32.mrb[0].mxu0
  %v1128 = vpop.f32.mrb[0].mxu0
  %v1129 = vadd.f32 %v1058, %v1128
  %v1130 = vpop.f32.mrb[0].mxu0
  %1131 = vmatprep.mubr.bf16.mxu0 0
  %1132 = vmatmul.mubr.bf16.gmra.mrb[0].mxu0 %v1078
  %v1133 = vpop.f32.mrb[0].mxu0
  %v1134 = vadd.f32 %v1058, %v1133
  %v1135 = vpop.f32.mrb[0].mxu0
  %v1136 = vpop.f32.mrb[0].mxu0
  %v1137 = vadd.f32 %v1058, %v1136
  %v1138 = vpop.f32.mrb[0].mxu0
  %1139 = vmatprep.mubr.bf16.mxu0 0
  %1140 = vmatmul.mubr.bf16.gmra.mrb[0].mxu0 %v1081
  %v1141 = vpop.f32.mrb[0].mxu0
  %v1142 = vadd.f32 %v1058, %v1141
  %v1143 = vpop.f32.mrb[0].mxu0
  %v1144 = vpop.f32.mrb[0].mxu0
  %v1145 = vadd.f32 %v1058, %v1144
  %v1146 = vpop.f32.mrb[0].mxu0
  %1147 = vdwg.mxu0
  %1156 = vrot.lane.b32.xlu0 %v1008, 96
  %v1157 = vpop.permute.xlu0 %1156
  %1158 = vrot.lane.b32.xlu0 %v1011, 96
  %v1159 = vpop.permute.xlu0 %1158
  %1160 = vrot.lane.b32.xlu0 %v1016, 96
  %v1161 = vpop.permute.xlu0 %1160
  %1162 = vrot.lane.b32.xlu0 %v1019, 96
  %v1163 = vpop.permute.xlu0 %1162
  %1164 = vrot.lane.b32.xlu0 %v1024, 96
  %v1165 = vpop.permute.xlu0 %1164
  %1166 = vrot.lane.b32.xlu0 %v1027, 96
  %v1167 = vpop.permute.xlu0 %1166
  %1168 = vrot.lane.b32.xlu0 %v1032, 96
  %v1169 = vpop.permute.xlu0 %1168
  %1170 = vrot.lane.b32.xlu0 %v1035, 96
  %v1171 = vpop.permute.xlu0 %1170
  %v1180 = vadd.f32 %v1118, %v1157
  %v1181 = vadd.f32 %v1121, %v1159
  %v1182 = vadd.f32 %v1126, %v1161
  %v1183 = vadd.f32 %v1129, %v1163
  %v1184 = vadd.f32 %v1134, %v1165
  %v1185 = vadd.f32 %v1137, %v1167
  %v1186 = vadd.f32 %v1142, %v1169
  %v1187 = vadd.f32 %v1145, %v1171
  %v1188 = vld [vmem:[%s2 + $0x9] sm:$0x1]
  %v1189 = vld [vmem:[%s2 + $0xa] sm:$0x1]
  %v1190 = vsel %vm305, %v1180, 0.0
  %1191 = vadd.xlane.f32.xlu0 %v1190
  %v1192 = vpop.xlane.xlu0 %1191
  %v1193 = vsel %vm305, %v1181, 0.0
  %1194 = vadd.xlane.f32.xlu0 %v1193
  %v1195 = vpop.xlane.xlu0 %1194
  %v1196 = vsel %vm305, %v1182, 0.0
  %1197 = vadd.xlane.f32.xlu0 %v1196
  %v1198 = vpop.xlane.xlu0 %1197
  %v1199 = vsel %vm305, %v1183, 0.0
  %1200 = vadd.xlane.f32.xlu0 %v1199
  %v1201 = vpop.xlane.xlu0 %1200
  %v1202 = vsel %vm305, %v1184, 0.0
  %1203 = vadd.xlane.f32.xlu0 %v1202
  %v1204 = vpop.xlane.xlu0 %1203
  %v1205 = vsel %vm305, %v1185, 0.0
  %1206 = vadd.xlane.f32.xlu0 %v1205
  %v1207 = vpop.xlane.xlu0 %1206
  %v1208 = vsel %vm305, %v1186, 0.0
  %1209 = vadd.xlane.f32.xlu0 %v1208
  %v1210 = vpop.xlane.xlu0 %1209
  %v1211 = vsel %vm305, %v1187, 0.0
  %1212 = vadd.xlane.f32.xlu0 %v1211
  %v1213 = vpop.xlane.xlu0 %1212
  %v1214 = vrcp.pop 32.0
  %v1215 = vmul.f32 %v1192, %v1214
  %v1216 = vmul.f32 %v1195, %v1214
  %v1217 = vmul.f32 %v1198, %v1214
  %v1218 = vmul.f32 %v1201, %v1214
  %v1219 = vmul.f32 %v1204, %v1214
  %v1220 = vmul.f32 %v1207, %v1214
  %v1221 = vmul.f32 %v1210, %v1214
  %v1222 = vmul.f32 %v1213, %v1214
  %v1223 = vsub.f32 %v1180, %v1215
  %v1224 = vsub.f32 %v1181, %v1216
  %v1225 = vsub.f32 %v1182, %v1217
  %v1226 = vsub.f32 %v1183, %v1218
  %v1227 = vsub.f32 %v1184, %v1219
  %v1228 = vsub.f32 %v1185, %v1220
  %v1229 = vsub.f32 %v1186, %v1221
  %v1230 = vsub.f32 %v1187, %v1222
  %v1231 = vmul.f32 %v1223, %v1223
  %v1232 = vmul.f32 %v1224, %v1224
  %v1233 = vmul.f32 %v1225, %v1225
  %v1234 = vmul.f32 %v1226, %v1226
  %v1235 = vmul.f32 %v1227, %v1227
  %v1236 = vmul.f32 %v1228, %v1228
  %v1237 = vmul.f32 %v1229, %v1229
  %v1238 = vmul.f32 %v1230, %v1230
  %v1239 = vsel %vm305, %v1231, 0.0
  %1240 = vadd.xlane.f32.xlu0 %v1239
  %v1241 = vpop.xlane.xlu0 %1240
  %v1242 = vsel %vm305, %v1232, 0.0
  %1243 = vadd.xlane.f32.xlu0 %v1242
  %v1244 = vpop.xlane.xlu0 %1243
  %v1245 = vsel %vm305, %v1233, 0.0
  %1246 = vadd.xlane.f32.xlu0 %v1245
  %v1247 = vpop.xlane.xlu0 %1246
  %v1248 = vsel %vm305, %v1234, 0.0
  %1249 = vadd.xlane.f32.xlu0 %v1248
  %v1250 = vpop.xlane.xlu0 %1249
  %v1251 = vsel %vm305, %v1235, 0.0
  %1252 = vadd.xlane.f32.xlu0 %v1251
  %v1253 = vpop.xlane.xlu0 %1252
  %v1254 = vsel %vm305, %v1236, 0.0
  %1255 = vadd.xlane.f32.xlu0 %v1254
  %v1256 = vpop.xlane.xlu0 %1255
  %v1257 = vsel %vm305, %v1237, 0.0
  %1258 = vadd.xlane.f32.xlu0 %v1257
  %v1259 = vpop.xlane.xlu0 %1258
  %v1260 = vsel %vm305, %v1238, 0.0
  %1261 = vadd.xlane.f32.xlu0 %v1260
  %v1262 = vpop.xlane.xlu0 %1261
  %v1263 = vmul.f32 %v1241, %v1214
  %v1264 = vmul.f32 %v1244, %v1214
  %v1265 = vmul.f32 %v1247, %v1214
  %v1266 = vmul.f32 %v1250, %v1214
  %v1267 = vmul.f32 %v1253, %v1214
  %v1268 = vmul.f32 %v1256, %v1214
  %v1269 = vmul.f32 %v1259, %v1214
  %v1270 = vmul.f32 %v1262, %v1214
  %v1271 = vadd.f32 %v1263, 1e-05
  %v1272 = vadd.f32 %v1264, 1e-05
  %v1273 = vadd.f32 %v1265, 1e-05
  %v1274 = vadd.f32 %v1266, 1e-05
  %v1275 = vadd.f32 %v1267, 1e-05
  %v1276 = vadd.f32 %v1268, 1e-05
  %v1277 = vadd.f32 %v1269, 1e-05
  %v1278 = vadd.f32 %v1270, 1e-05
  %v1279 = vrsqrt.pop %v1271
  %v1280 = vrsqrt.pop %v1272
  %v1281 = vrsqrt.pop %v1273
  %v1282 = vrsqrt.pop %v1274
  %v1283 = vrsqrt.pop %v1275
  %v1284 = vrsqrt.pop %v1276
  %v1285 = vrsqrt.pop %v1277
  %v1286 = vrsqrt.pop %v1278
  %v1287 = vmul.f32 %v1223, %v1279
  %v1288 = vmul.f32 %v1224, %v1280
  %v1289 = vmul.f32 %v1225, %v1281
  %v1290 = vmul.f32 %v1226, %v1282
  %v1291 = vmul.f32 %v1227, %v1283
  %v1292 = vmul.f32 %v1228, %v1284
  %v1293 = vmul.f32 %v1229, %v1285
  %v1294 = vmul.f32 %v1230, %v1286
  %v1295 = vlaneseq
  %v1296 = vshrl.u32 %v1295, 7
  %v1297 = vsub.s32 0, %v1296
  %v1298 = vrot.slane %v1188, %v1297
  %v1299 = vmul.f32 %v1287, %v1298
  %v1300 = vmul.f32 %v1288, %v1298
  %v1301 = vmul.f32 %v1289, %v1298
  %v1302 = vmul.f32 %v1290, %v1298
  %v1303 = vmul.f32 %v1291, %v1298
  %v1304 = vmul.f32 %v1292, %v1298
  %v1305 = vmul.f32 %v1293, %v1298
  %v1306 = vmul.f32 %v1294, %v1298
  %v1307 = vlaneseq
  %v1308 = vshrl.u32 %v1307, 7
  %v1309 = vsub.s32 0, %v1308
  %v1310 = vrot.slane %v1189, %v1309
  %v1311 = vadd.f32 %v1299, %v1310
  %v1312 = vadd.f32 %v1300, %v1310
  %v1313 = vadd.f32 %v1301, %v1310
  %v1314 = vadd.f32 %v1302, %v1310
  %v1315 = vadd.f32 %v1303, %v1310
  %v1316 = vadd.f32 %v1304, %v1310
  %v1317 = vadd.f32 %v1305, %v1310
  %v1318 = vadd.f32 %v1306, %v1310
  %v1319 = vsub.f32 %v1311, %v104
  %v1320 = vsub.f32 %v1312, %v107
  %v1321 = vsub.f32 %v1313, %v112
  %v1322 = vsub.f32 %v1314, %v115
  %v1323 = vsub.f32 %v1315, %v120
  %v1324 = vsub.f32 %v1316, %v123
  %v1325 = vsub.f32 %v1317, %v128
  %v1326 = vsub.f32 %v1318, %v131
  %v1327 = vmul.f32 %v1319, %v1319
  %v1328 = vmul.f32 %v1320, %v1320
  %v1329 = vmul.f32 %v1321, %v1321
  %v1330 = vmul.f32 %v1322, %v1322
  %v1331 = vmul.f32 %v1323, %v1323
  %v1332 = vmul.f32 %v1324, %v1324
  %v1333 = vmul.f32 %v1325, %v1325
  %v1334 = vmul.f32 %v1326, %v1326
  %v1335 = vsel %vm305, %v1327, 0.0
  %1336 = vadd.xlane.f32.xlu0 %v1335
  %v1337 = vpop.xlane.xlu0 %1336
  %v1338 = vsel %vm305, %v1328, 0.0
  %1339 = vadd.xlane.f32.xlu0 %v1338
  %v1340 = vpop.xlane.xlu0 %1339
  %v1341 = vsel %vm305, %v1329, 0.0
  %1342 = vadd.xlane.f32.xlu0 %v1341
  %v1343 = vpop.xlane.xlu0 %1342
  %v1344 = vsel %vm305, %v1330, 0.0
  %1345 = vadd.xlane.f32.xlu0 %v1344
  %v1346 = vpop.xlane.xlu0 %1345
  %v1347 = vsel %vm305, %v1331, 0.0
  %1348 = vadd.xlane.f32.xlu0 %v1347
  %v1349 = vpop.xlane.xlu0 %1348
  %v1350 = vsel %vm305, %v1332, 0.0
  %1351 = vadd.xlane.f32.xlu0 %v1350
  %v1352 = vpop.xlane.xlu0 %1351
  %v1353 = vsel %vm305, %v1333, 0.0
  %1354 = vadd.xlane.f32.xlu0 %v1353
  %v1355 = vpop.xlane.xlu0 %1354
  %v1356 = vsel %vm305, %v1334, 0.0
  %1357 = vadd.xlane.f32.xlu0 %v1356
  %v1358 = vpop.xlane.xlu0 %1357
  %1359 = vst.msk [vmem:[%s3] sm:$0xff] %vm305, %v104
  %1360 = vst.msk [vmem:[%s3 + $0x8] sm:$0xff] %vm305, %v107
  %1361 = vst.msk [vmem:[%s3 + $0x10] sm:$0xff] %vm305, %v112
  %1362 = vst.msk [vmem:[%s3 + $0x18] sm:$0xff] %vm305, %v115
  %1363 = vst.msk [vmem:[%s3 + $0x20] sm:$0xff] %vm305, %v120
  %1364 = vst.msk [vmem:[%s3 + $0x28] sm:$0xff] %vm305, %v123
  %1365 = vst.msk [vmem:[%s3 + $0x30] sm:$0xff] %vm305, %v128
  %1366 = vst.msk [vmem:[%s3 + $0x38] sm:$0xff] %vm305, %v131
  %1375 = vrot.lane.b32.xlu0 %v566, 32
  %v1376 = vpop.permute.xlu0 %1375
  %1377 = vrot.lane.b32.xlu0 %v567, 32
  %v1378 = vpop.permute.xlu0 %1377
  %1379 = vrot.lane.b32.xlu0 %v568, 32
  %v1380 = vpop.permute.xlu0 %1379
  %1381 = vrot.lane.b32.xlu0 %v569, 32
  %v1382 = vpop.permute.xlu0 %1381
  %1383 = vrot.lane.b32.xlu0 %v570, 32
  %v1384 = vpop.permute.xlu0 %1383
  %1385 = vrot.lane.b32.xlu0 %v571, 32
  %v1386 = vpop.permute.xlu0 %1385
  %1387 = vrot.lane.b32.xlu0 %v572, 32
  %v1388 = vpop.permute.xlu0 %1387
  %1389 = vrot.lane.b32.xlu0 %v573, 32
  %v1390 = vpop.permute.xlu0 %1389
  %vm1399 = vcmask 523520
  %1400 = vst.msk [vmem:[%s3] sm:$0xff] %vm1399, %v1376
  %1401 = vst.msk [vmem:[%s3 + $0x8] sm:$0xff] %vm1399, %v1378
  %1402 = vst.msk [vmem:[%s3 + $0x10] sm:$0xff] %vm1399, %v1380
  %1403 = vst.msk [vmem:[%s3 + $0x18] sm:$0xff] %vm1399, %v1382
  %1404 = vst.msk [vmem:[%s3 + $0x20] sm:$0xff] %vm1399, %v1384
  %1405 = vst.msk [vmem:[%s3 + $0x28] sm:$0xff] %vm1399, %v1386
  %1406 = vst.msk [vmem:[%s3 + $0x30] sm:$0xff] %vm1399, %v1388
  %1407 = vst.msk [vmem:[%s3 + $0x38] sm:$0xff] %vm1399, %v1390
  %vm1408 = vcmask 531968
  %1409 = vst.msk [vmem:[%s3] sm:$0xff] %vm1408, %v1337
  %1410 = vst.msk [vmem:[%s3 + $0x8] sm:$0xff] %vm1408, %v1340
  %1411 = vst.msk [vmem:[%s3 + $0x10] sm:$0xff] %vm1408, %v1343
  %1412 = vst.msk [vmem:[%s3 + $0x18] sm:$0xff] %vm1408, %v1346
  %1413 = vst.msk [vmem:[%s3 + $0x20] sm:$0xff] %vm1408, %v1349
  %1414 = vst.msk [vmem:[%s3 + $0x28] sm:$0xff] %vm1408, %v1352
  %1415 = vst.msk [vmem:[%s3 + $0x30] sm:$0xff] %vm1408, %v1355
  %1416 = vst.msk [vmem:[%s3 + $0x38] sm:$0xff] %vm1408, %v1358
  // Predicated region
  $region14: #{forward.1} parent=0 // pred_check
    _
  $region15: #{forward.1} parent=0 // pred_check_branch
    %1418 = sbr.rel (0) target = $region17
  $region16: #{forward.1} parent=0 // pred_region
    _
  $region17: #{forward.1} parent=0 // pred_fallthru
    _
  // Predicated region
  $region18: #{forward.1} parent=0 // pred_check
    _
  $region19: #{forward.1} parent=0 // pred_check_branch
    %1420 = sbr.rel (0) target = $region21
  $region20: #{forward.1} parent=0 // pred_region
    _
  $region21: #{forward.1} parent=0 // pred_fallthru
    _

</llo_original>
